<compile_context>
chip_gen: v7x
topology: tpu7x:2x2x1
jax: 0.10.0
libtpu: 0.0.40
codegen_flags: <defaults>
</compile_context>

<pallas_src>
import jax
import jax.numpy as jnp
from jax.experimental import pallas as pl
from jax.experimental.pallas import tpu as pltpu

IN_CH = 32
OUT_CH = 16
KD = KH = KW = 3


def conv3d_pallas(x_ncdhw, weight_oidhw, bias):
    N, Cin, D, H, W = x_ncdhw.shape
    assert N == 1 and Cin == IN_CH
    Cout = weight_oidhw.shape[0]
    Dout, Hout, Wout = D - KD + 1, H - KH + 1, W - KW + 1

    # Flattened-spatial output width per plane (keeps W-Wout wrap columns,
    # discarded in the wrapper) and zero-padded input plane length so the
    # largest tap window (kh=2, kw=2) stays in bounds.
    M = Hout * W
    HWp = ((H * W + (KW - 1) + 127) // 128) * 128

    # --- wrapper-side layout glue (pure XLA) -------------------------------
    # x: (1, Cin, D, H, W) -> (D, Cin, H*W) channels-first, spatial flat, bf16.
    x_cf = jnp.transpose(x_ncdhw[0], (1, 0, 2, 3)).reshape(D, Cin, H * W)
    x_cf = jnp.pad(x_cf, ((0, 0), (0, 0), (0, HWp - H * W))).astype(jnp.bfloat16)
    # weight: (Cout, Cin, KD, KH, KW) -> (KD*KH*KW, Cout, Cin) bf16.
    w_t = jnp.transpose(weight_oidhw, (2, 3, 4, 0, 1))
    w_t = w_t.reshape(KD * KH * KW, Cout, Cin).astype(jnp.bfloat16)
    b2 = bias.reshape(Cout, 1).astype(jnp.float32)

    # --- kernel: one whole output depth-plane per grid step ----------------
    def kernel(x_ref, w_ref, b_ref, o_ref):
        od = pl.program_id(0)
        # Accumulator initialised from the bias (broadcast along lanes).
        acc = jnp.broadcast_to(b_ref[...], (Cout, M))
        # 27 taps, each a (Cout, Cin) @ (Cin, M) bf16 matmul, f32 accumulate.
        for kd in range(KD):
            for kh in range(KH):
                for kw in range(KW):
                    t = (kd * KH + kh) * KW + kw
                    rhs = x_ref[od + kd, :, pl.ds(kh * W + kw, M)]   # (Cin, M)
                    acc = acc + jnp.dot(w_ref[t], rhs,
                                        preferred_element_type=jnp.float32)
        o_ref[...] = acc.reshape(1, Cout, M).astype(o_ref.dtype)

    out = pl.pallas_call(
        kernel,
        out_shape=jax.ShapeDtypeStruct((Dout, Cout, M), jnp.float32),
        grid=(Dout,),
        in_specs=[
            # x / weight / bias stay fully resident in VMEM (constant block idx).
            pl.BlockSpec((D, Cin, HWp), lambda od: (0, 0, 0)),
            pl.BlockSpec((KD * KH * KW, Cout, Cin), lambda od: (0, 0, 0)),
            pl.BlockSpec((Cout, 1), lambda od: (0, 0)),
        ],
        out_specs=pl.BlockSpec((1, Cout, M), lambda od: (od, 0, 0)),
        compiler_params=pltpu.CompilerParams(
            dimension_semantics=("parallel",)),
    )(x_cf, w_t, b2)

    # (Dout, Cout, Hout*W) -> drop wrap columns -> PyTorch NCDHW.
    out = out.reshape(Dout, Cout, Hout, W)[:, :, :, :Wout]
    return jnp.transpose(out, (1, 0, 2, 3))[None]   # (1, Cout, Dout, Hout, Wout)


if __name__ == "__main__":
    key = jax.random.PRNGKey(0)
    kx, kw_, kb = jax.random.split(key, 3)

    # Small shapes consistent with the module: N=1, Cin=32, depth=8, H=W=16.
    D, H, W = 8, 16, 16
    x = jax.random.uniform(kx, (1, IN_CH, D, H, W), dtype=jnp.float32)
    weight = jax.random.normal(kw_, (OUT_CH, IN_CH, KD, KH, KW), dtype=jnp.float32) * 0.05
    bias = jax.random.normal(kb, (OUT_CH,), dtype=jnp.float32) * 0.1

    conv_fn = jax.jit(conv3d_pallas)
    out = jax.block_until_ready(conv_fn(x, weight, bias))

    # Reference with the same bf16-rounded inputs (kernel uses bf16 operands
    # with f32 accumulation), same NCDHW / OIDHW semantics as PyTorch.
    xq = x.astype(jnp.bfloat16).astype(jnp.float32)
    wq = weight.astype(jnp.bfloat16).astype(jnp.float32)
    ref = jax.lax.conv_general_dilated(
        xq, wq, window_strides=(1, 1, 1), padding="VALID",
        dimension_numbers=("NCDHW", "OIDHW", "NCDHW"),
    ) + bias.reshape(1, OUT_CH, 1, 1, 1)
    ref = jax.block_until_ready(ref)

    assert out.shape == (1, OUT_CH, D - 2, H - 2, W - 2), out.shape
    err = float(jnp.max(jnp.abs(out - ref)))
    assert jnp.allclose(out, ref, atol=3e-3, rtol=3e-3), err
    print("KERNEL_OK")
</pallas_src>

<mosaic_0001>
module attributes {stable_mosaic.version = 11 : i64} {
  func.func @kernel(%arg0: i32, %arg1: memref<8x32x384xbf16, #tpu.memory_space<vmem>>, %arg2: memref<27x16x32xbf16, #tpu.memory_space<vmem>>, %arg3: memref<16x1xf32, #tpu.memory_space<vmem>>, %arg4: memref<1x16x224xf32, #tpu.memory_space<vmem>>) attributes {dimension_semantics = [#tpu.dimension_semantics<parallel>], iteration_bounds = array<i64: 6>, scalar_prefetch = 0 : i64, scratch_operands = 0 : i64, tpu.core_type = #tpu.core_type<tc>, window_params = [{pipeline_mode = #tpu.pipeline_mode<synchronous>, transform_indices = @transform_0, window_bounds = array<i64: 8, 32, 384>}, {pipeline_mode = #tpu.pipeline_mode<synchronous>, transform_indices = @transform_1, window_bounds = array<i64: 27, 16, 32>}, {pipeline_mode = #tpu.pipeline_mode<synchronous>, transform_indices = @transform_2, window_bounds = array<i64: 16, 1>}, {transform_indices = @transform_3, window_bounds = array<i64: 1, 16, 224>}]} {
    %c0 = arith.constant 0 : index
    %c0_0 = arith.constant 0 : index
    %0 = vector.load %arg3[%c0, %c0_0] : memref<16x1xf32, #tpu.memory_space<vmem>>, vector<16x1xf32>
    %1 = vector.shape_cast %0 : vector<16x1xf32> to vector<16x1xf32>
    %2 = vector.broadcast %1 : vector<16x1xf32> to vector<16x224xf32>
    %c0_i32 = arith.constant 0 : i32
    %3 = arith.addi %arg0, %c0_i32 : i32
    %4 = arith.index_cast %3 : i32 to index
    %c0_1 = arith.constant 0 : index
    %c0_2 = arith.constant 0 : index
    %5 = vector.load %arg1[%4, %c0_1, %c0_2] : memref<8x32x384xbf16, #tpu.memory_space<vmem>>, vector<1x32x224xbf16>
    %6 = vector.shape_cast %5 : vector<1x32x224xbf16> to vector<32x224xbf16>
    %c0_3 = arith.constant 0 : index
    %c0_4 = arith.constant 0 : index
    %c0_5 = arith.constant 0 : index
    %7 = vector.load %arg2[%c0_3, %c0_4, %c0_5] : memref<27x16x32xbf16, #tpu.memory_space<vmem>>, vector<1x16x32xbf16>
    %8 = vector.shape_cast %7 : vector<1x16x32xbf16> to vector<16x32xbf16>
    %cst = arith.constant dense<0.000000e+00> : vector<16x224xf32>
    %9 = tpu.matmul %8, %6, %cst {dimension_numbers = #tpu.dot_dimension_numbers<[1], [0], [0], [1], [0, 0, 1, 1], [], []>} : vector<16x32xbf16>, vector<32x224xbf16>, vector<16x224xf32> -> vector<16x224xf32>
    %10 = arith.addf %2, %9 : vector<16x224xf32>
    %c0_i32_6 = arith.constant 0 : i32
    %11 = arith.addi %arg0, %c0_i32_6 : i32
    %12 = arith.index_cast %11 : i32 to index
    %c0_7 = arith.constant 0 : index
    %c1 = arith.constant 1 : index
    %13 = vector.load %arg1[%12, %c0_7, %c1] : memref<8x32x384xbf16, #tpu.memory_space<vmem>>, vector<1x32x224xbf16>
    %14 = vector.shape_cast %13 : vector<1x32x224xbf16> to vector<32x224xbf16>
    %c1_8 = arith.constant 1 : index
    %c0_9 = arith.constant 0 : index
    %c0_10 = arith.constant 0 : index
    %15 = vector.load %arg2[%c1_8, %c0_9, %c0_10] : memref<27x16x32xbf16, #tpu.memory_space<vmem>>, vector<1x16x32xbf16>
    %16 = vector.shape_cast %15 : vector<1x16x32xbf16> to vector<16x32xbf16>
    %cst_11 = arith.constant dense<0.000000e+00> : vector<16x224xf32>
    %17 = tpu.matmul %16, %14, %cst_11 {dimension_numbers = #tpu.dot_dimension_numbers<[1], [0], [0], [1], [0, 0, 1, 1], [], []>} : vector<16x32xbf16>, vector<32x224xbf16>, vector<16x224xf32> -> vector<16x224xf32>
    %18 = arith.addf %10, %17 : vector<16x224xf32>
    %c0_i32_12 = arith.constant 0 : i32
    %19 = arith.addi %arg0, %c0_i32_12 : i32
    %20 = arith.index_cast %19 : i32 to index
    %c0_13 = arith.constant 0 : index
    %c2 = arith.constant 2 : index
    %21 = vector.load %arg1[%20, %c0_13, %c2] : memref<8x32x384xbf16, #tpu.memory_space<vmem>>, vector<1x32x224xbf16>
    %22 = vector.shape_cast %21 : vector<1x32x224xbf16> to vector<32x224xbf16>
    %c2_14 = arith.constant 2 : index
    %c0_15 = arith.constant 0 : index
    %c0_16 = arith.constant 0 : index
    %23 = vector.load %arg2[%c2_14, %c0_15, %c0_16] : memref<27x16x32xbf16, #tpu.memory_space<vmem>>, vector<1x16x32xbf16>
    %24 = vector.shape_cast %23 : vector<1x16x32xbf16> to vector<16x32xbf16>
    %cst_17 = arith.constant dense<0.000000e+00> : vector<16x224xf32>
    %25 = tpu.matmul %24, %22, %cst_17 {dimension_numbers = #tpu.dot_dimension_numbers<[1], [0], [0], [1], [0, 0, 1, 1], [], []>} : vector<16x32xbf16>, vector<32x224xbf16>, vector<16x224xf32> -> vector<16x224xf32>
    %26 = arith.addf %18, %25 : vector<16x224xf32>
    %c0_i32_18 = arith.constant 0 : i32
    %27 = arith.addi %arg0, %c0_i32_18 : i32
    %28 = arith.index_cast %27 : i32 to index
    %c0_19 = arith.constant 0 : index
    %c16 = arith.constant 16 : index
    %29 = vector.load %arg1[%28, %c0_19, %c16] : memref<8x32x384xbf16, #tpu.memory_space<vmem>>, vector<1x32x224xbf16>
    %30 = vector.shape_cast %29 : vector<1x32x224xbf16> to vector<32x224xbf16>
    %c3 = arith.constant 3 : index
    %c0_20 = arith.constant 0 : index
    %c0_21 = arith.constant 0 : index
    %31 = vector.load %arg2[%c3, %c0_20, %c0_21] : memref<27x16x32xbf16, #tpu.memory_space<vmem>>, vector<1x16x32xbf16>
    %32 = vector.shape_cast %31 : vector<1x16x32xbf16> to vector<16x32xbf16>
    %cst_22 = arith.constant dense<0.000000e+00> : vector<16x224xf32>
    %33 = tpu.matmul %32, %30, %cst_22 {dimension_numbers = #tpu.dot_dimension_numbers<[1], [0], [0], [1], [0, 0, 1, 1], [], []>} : vector<16x32xbf16>, vector<32x224xbf16>, vector<16x224xf32> -> vector<16x224xf32>
    %34 = arith.addf %26, %33 : vector<16x224xf32>
    %c0_i32_23 = arith.constant 0 : i32
    %35 = arith.addi %arg0, %c0_i32_23 : i32
    %36 = arith.index_cast %35 : i32 to index
    %c0_24 = arith.constant 0 : index
    %c17 = arith.constant 17 : index
    %37 = vector.load %arg1[%36, %c0_24, %c17] : memref<8x32x384xbf16, #tpu.memory_space<vmem>>, vector<1x32x224xbf16>
    %38 = vector.shape_cast %37 : vector<1x32x224xbf16> to vector<32x224xbf16>
    %c4 = arith.constant 4 : index
    %c0_25 = arith.constant 0 : index
    %c0_26 = arith.constant 0 : index
    %39 = vector.load %arg2[%c4, %c0_25, %c0_26] : memref<27x16x32xbf16, #tpu.memory_space<vmem>>, vector<1x16x32xbf16>
    %40 = vector.shape_cast %39 : vector<1x16x32xbf16> to vector<16x32xbf16>
    %cst_27 = arith.constant dense<0.000000e+00> : vector<16x224xf32>
    %41 = tpu.matmul %40, %38, %cst_27 {dimension_numbers = #tpu.dot_dimension_numbers<[1], [0], [0], [1], [0, 0, 1, 1], [], []>} : vector<16x32xbf16>, vector<32x224xbf16>, vector<16x224xf32> -> vector<16x224xf32>
    %42 = arith.addf %34, %41 : vector<16x224xf32>
    %c0_i32_28 = arith.constant 0 : i32
    %43 = arith.addi %arg0, %c0_i32_28 : i32
    %44 = arith.index_cast %43 : i32 to index
    %c0_29 = arith.constant 0 : index
    %c18 = arith.constant 18 : index
    %45 = vector.load %arg1[%44, %c0_29, %c18] : memref<8x32x384xbf16, #tpu.memory_space<vmem>>, vector<1x32x224xbf16>
    %46 = vector.shape_cast %45 : vector<1x32x224xbf16> to vector<32x224xbf16>
    %c5 = arith.constant 5 : index
    %c0_30 = arith.constant 0 : index
    %c0_31 = arith.constant 0 : index
    %47 = vector.load %arg2[%c5, %c0_30, %c0_31] : memref<27x16x32xbf16, #tpu.memory_space<vmem>>, vector<1x16x32xbf16>
    %48 = vector.shape_cast %47 : vector<1x16x32xbf16> to vector<16x32xbf16>
    %cst_32 = arith.constant dense<0.000000e+00> : vector<16x224xf32>
    %49 = tpu.matmul %48, %46, %cst_32 {dimension_numbers = #tpu.dot_dimension_numbers<[1], [0], [0], [1], [0, 0, 1, 1], [], []>} : vector<16x32xbf16>, vector<32x224xbf16>, vector<16x224xf32> -> vector<16x224xf32>
    %50 = arith.addf %42, %49 : vector<16x224xf32>
    %c0_i32_33 = arith.constant 0 : i32
    %51 = arith.addi %arg0, %c0_i32_33 : i32
    %52 = arith.index_cast %51 : i32 to index
    %c0_34 = arith.constant 0 : index
    %c32 = arith.constant 32 : index
    %53 = vector.load %arg1[%52, %c0_34, %c32] : memref<8x32x384xbf16, #tpu.memory_space<vmem>>, vector<1x32x224xbf16>
    %54 = vector.shape_cast %53 : vector<1x32x224xbf16> to vector<32x224xbf16>
    %c6 = arith.constant 6 : index
    %c0_35 = arith.constant 0 : index
    %c0_36 = arith.constant 0 : index
    %55 = vector.load %arg2[%c6, %c0_35, %c0_36] : memref<27x16x32xbf16, #tpu.memory_space<vmem>>, vector<1x16x32xbf16>
    %56 = vector.shape_cast %55 : vector<1x16x32xbf16> to vector<16x32xbf16>
    %cst_37 = arith.constant dense<0.000000e+00> : vector<16x224xf32>
    %57 = tpu.matmul %56, %54, %cst_37 {dimension_numbers = #tpu.dot_dimension_numbers<[1], [0], [0], [1], [0, 0, 1, 1], [], []>} : vector<16x32xbf16>, vector<32x224xbf16>, vector<16x224xf32> -> vector<16x224xf32>
    %58 = arith.addf %50, %57 : vector<16x224xf32>
    %c0_i32_38 = arith.constant 0 : i32
    %59 = arith.addi %arg0, %c0_i32_38 : i32
    %60 = arith.index_cast %59 : i32 to index
    %c0_39 = arith.constant 0 : index
    %c33 = arith.constant 33 : index
    %61 = vector.load %arg1[%60, %c0_39, %c33] : memref<8x32x384xbf16, #tpu.memory_space<vmem>>, vector<1x32x224xbf16>
    %62 = vector.shape_cast %61 : vector<1x32x224xbf16> to vector<32x224xbf16>
    %c7 = arith.constant 7 : index
    %c0_40 = arith.constant 0 : index
    %c0_41 = arith.constant 0 : index
    %63 = vector.load %arg2[%c7, %c0_40, %c0_41] : memref<27x16x32xbf16, #tpu.memory_space<vmem>>, vector<1x16x32xbf16>
    %64 = vector.shape_cast %63 : vector<1x16x32xbf16> to vector<16x32xbf16>
    %cst_42 = arith.constant dense<0.000000e+00> : vector<16x224xf32>
    %65 = tpu.matmul %64, %62, %cst_42 {dimension_numbers = #tpu.dot_dimension_numbers<[1], [0], [0], [1], [0, 0, 1, 1], [], []>} : vector<16x32xbf16>, vector<32x224xbf16>, vector<16x224xf32> -> vector<16x224xf32>
    %66 = arith.addf %58, %65 : vector<16x224xf32>
    %c0_i32_43 = arith.constant 0 : i32
    %67 = arith.addi %arg0, %c0_i32_43 : i32
    %68 = arith.index_cast %67 : i32 to index
    %c0_44 = arith.constant 0 : index
    %c34 = arith.constant 34 : index
    %69 = vector.load %arg1[%68, %c0_44, %c34] : memref<8x32x384xbf16, #tpu.memory_space<vmem>>, vector<1x32x224xbf16>
    %70 = vector.shape_cast %69 : vector<1x32x224xbf16> to vector<32x224xbf16>
    %c8 = arith.constant 8 : index
    %c0_45 = arith.constant 0 : index
    %c0_46 = arith.constant 0 : index
    %71 = vector.load %arg2[%c8, %c0_45, %c0_46] : memref<27x16x32xbf16, #tpu.memory_space<vmem>>, vector<1x16x32xbf16>
    %72 = vector.shape_cast %71 : vector<1x16x32xbf16> to vector<16x32xbf16>
    %cst_47 = arith.constant dense<0.000000e+00> : vector<16x224xf32>
    %73 = tpu.matmul %72, %70, %cst_47 {dimension_numbers = #tpu.dot_dimension_numbers<[1], [0], [0], [1], [0, 0, 1, 1], [], []>} : vector<16x32xbf16>, vector<32x224xbf16>, vector<16x224xf32> -> vector<16x224xf32>
    %74 = arith.addf %66, %73 : vector<16x224xf32>
    %c1_i32 = arith.constant 1 : i32
    %75 = arith.addi %arg0, %c1_i32 : i32
    %76 = arith.index_cast %75 : i32 to index
    %c0_48 = arith.constant 0 : index
    %c0_49 = arith.constant 0 : index
    %77 = vector.load %arg1[%76, %c0_48, %c0_49] : memref<8x32x384xbf16, #tpu.memory_space<vmem>>, vector<1x32x224xbf16>
    %78 = vector.shape_cast %77 : vector<1x32x224xbf16> to vector<32x224xbf16>
    %c9 = arith.constant 9 : index
    %c0_50 = arith.constant 0 : index
    %c0_51 = arith.constant 0 : index
    %79 = vector.load %arg2[%c9, %c0_50, %c0_51] : memref<27x16x32xbf16, #tpu.memory_space<vmem>>, vector<1x16x32xbf16>
    %80 = vector.shape_cast %79 : vector<1x16x32xbf16> to vector<16x32xbf16>
    %cst_52 = arith.constant dense<0.000000e+00> : vector<16x224xf32>
    %81 = tpu.matmul %80, %78, %cst_52 {dimension_numbers = #tpu.dot_dimension_numbers<[1], [0], [0], [1], [0, 0, 1, 1], [], []>} : vector<16x32xbf16>, vector<32x224xbf16>, vector<16x224xf32> -> vector<16x224xf32>
    %82 = arith.addf %74, %81 : vector<16x224xf32>
    %c1_i32_53 = arith.constant 1 : i32
    %83 = arith.addi %arg0, %c1_i32_53 : i32
    %84 = arith.index_cast %83 : i32 to index
    %c0_54 = arith.constant 0 : index
    %c1_55 = arith.constant 1 : index
    %85 = vector.load %arg1[%84, %c0_54, %c1_55] : memref<8x32x384xbf16, #tpu.memory_space<vmem>>, vector<1x32x224xbf16>
    %86 = vector.shape_cast %85 : vector<1x32x224xbf16> to vector<32x224xbf16>
    %c10 = arith.constant 10 : index
    %c0_56 = arith.constant 0 : index
    %c0_57 = arith.constant 0 : index
    %87 = vector.load %arg2[%c10, %c0_56, %c0_57] : memref<27x16x32xbf16, #tpu.memory_space<vmem>>, vector<1x16x32xbf16>
    %88 = vector.shape_cast %87 : vector<1x16x32xbf16> to vector<16x32xbf16>
    %cst_58 = arith.constant dense<0.000000e+00> : vector<16x224xf32>
    %89 = tpu.matmul %88, %86, %cst_58 {dimension_numbers = #tpu.dot_dimension_numbers<[1], [0], [0], [1], [0, 0, 1, 1], [], []>} : vector<16x32xbf16>, vector<32x224xbf16>, vector<16x224xf32> -> vector<16x224xf32>
    %90 = arith.addf %82, %89 : vector<16x224xf32>
    %c1_i32_59 = arith.constant 1 : i32
    %91 = arith.addi %arg0, %c1_i32_59 : i32
    %92 = arith.index_cast %91 : i32 to index
    %c0_60 = arith.constant 0 : index
    %c2_61 = arith.constant 2 : index
    %93 = vector.load %arg1[%92, %c0_60, %c2_61] : memref<8x32x384xbf16, #tpu.memory_space<vmem>>, vector<1x32x224xbf16>
    %94 = vector.shape_cast %93 : vector<1x32x224xbf16> to vector<32x224xbf16>
    %c11 = arith.constant 11 : index
    %c0_62 = arith.constant 0 : index
    %c0_63 = arith.constant 0 : index
    %95 = vector.load %arg2[%c11, %c0_62, %c0_63] : memref<27x16x32xbf16, #tpu.memory_space<vmem>>, vector<1x16x32xbf16>
    %96 = vector.shape_cast %95 : vector<1x16x32xbf16> to vector<16x32xbf16>
    %cst_64 = arith.constant dense<0.000000e+00> : vector<16x224xf32>
    %97 = tpu.matmul %96, %94, %cst_64 {dimension_numbers = #tpu.dot_dimension_numbers<[1], [0], [0], [1], [0, 0, 1, 1], [], []>} : vector<16x32xbf16>, vector<32x224xbf16>, vector<16x224xf32> -> vector<16x224xf32>
    %98 = arith.addf %90, %97 : vector<16x224xf32>
    %c1_i32_65 = arith.constant 1 : i32
    %99 = arith.addi %arg0, %c1_i32_65 : i32
    %100 = arith.index_cast %99 : i32 to index
    %c0_66 = arith.constant 0 : index
    %c16_67 = arith.constant 16 : index
    %101 = vector.load %arg1[%100, %c0_66, %c16_67] : memref<8x32x384xbf16, #tpu.memory_space<vmem>>, vector<1x32x224xbf16>
    %102 = vector.shape_cast %101 : vector<1x32x224xbf16> to vector<32x224xbf16>
    %c12 = arith.constant 12 : index
    %c0_68 = arith.constant 0 : index
    %c0_69 = arith.constant 0 : index
    %103 = vector.load %arg2[%c12, %c0_68, %c0_69] : memref<27x16x32xbf16, #tpu.memory_space<vmem>>, vector<1x16x32xbf16>
    %104 = vector.shape_cast %103 : vector<1x16x32xbf16> to vector<16x32xbf16>
    %cst_70 = arith.constant dense<0.000000e+00> : vector<16x224xf32>
    %105 = tpu.matmul %104, %102, %cst_70 {dimension_numbers = #tpu.dot_dimension_numbers<[1], [0], [0], [1], [0, 0, 1, 1], [], []>} : vector<16x32xbf16>, vector<32x224xbf16>, vector<16x224xf32> -> vector<16x224xf32>
    %106 = arith.addf %98, %105 : vector<16x224xf32>
    %c1_i32_71 = arith.constant 1 : i32
    %107 = arith.addi %arg0, %c1_i32_71 : i32
    %108 = arith.index_cast %107 : i32 to index
    %c0_72 = arith.constant 0 : index
    %c17_73 = arith.constant 17 : index
    %109 = vector.load %arg1[%108, %c0_72, %c17_73] : memref<8x32x384xbf16, #tpu.memory_space<vmem>>, vector<1x32x224xbf16>
    %110 = vector.shape_cast %109 : vector<1x32x224xbf16> to vector<32x224xbf16>
    %c13 = arith.constant 13 : index
    %c0_74 = arith.constant 0 : index
    %c0_75 = arith.constant 0 : index
    %111 = vector.load %arg2[%c13, %c0_74, %c0_75] : memref<27x16x32xbf16, #tpu.memory_space<vmem>>, vector<1x16x32xbf16>
    %112 = vector.shape_cast %111 : vector<1x16x32xbf16> to vector<16x32xbf16>
    %cst_76 = arith.constant dense<0.000000e+00> : vector<16x224xf32>
    %113 = tpu.matmul %112, %110, %cst_76 {dimension_numbers = #tpu.dot_dimension_numbers<[1], [0], [0], [1], [0, 0, 1, 1], [], []>} : vector<16x32xbf16>, vector<32x224xbf16>, vector<16x224xf32> -> vector<16x224xf32>
    %114 = arith.addf %106, %113 : vector<16x224xf32>
    %c1_i32_77 = arith.constant 1 : i32
    %115 = arith.addi %arg0, %c1_i32_77 : i32
    %116 = arith.index_cast %115 : i32 to index
    %c0_78 = arith.constant 0 : index
    %c18_79 = arith.constant 18 : index
    %117 = vector.load %arg1[%116, %c0_78, %c18_79] : memref<8x32x384xbf16, #tpu.memory_space<vmem>>, vector<1x32x224xbf16>
    %118 = vector.shape_cast %117 : vector<1x32x224xbf16> to vector<32x224xbf16>
    %c14 = arith.constant 14 : index
    %c0_80 = arith.constant 0 : index
    %c0_81 = arith.constant 0 : index
    %119 = vector.load %arg2[%c14, %c0_80, %c0_81] : memref<27x16x32xbf16, #tpu.memory_space<vmem>>, vector<1x16x32xbf16>
    %120 = vector.shape_cast %119 : vector<1x16x32xbf16> to vector<16x32xbf16>
    %cst_82 = arith.constant dense<0.000000e+00> : vector<16x224xf32>
    %121 = tpu.matmul %120, %118, %cst_82 {dimension_numbers = #tpu.dot_dimension_numbers<[1], [0], [0], [1], [0, 0, 1, 1], [], []>} : vector<16x32xbf16>, vector<32x224xbf16>, vector<16x224xf32> -> vector<16x224xf32>
    %122 = arith.addf %114, %121 : vector<16x224xf32>
    %c1_i32_83 = arith.constant 1 : i32
    %123 = arith.addi %arg0, %c1_i32_83 : i32
    %124 = arith.index_cast %123 : i32 to index
    %c0_84 = arith.constant 0 : index
    %c32_85 = arith.constant 32 : index
    %125 = vector.load %arg1[%124, %c0_84, %c32_85] : memref<8x32x384xbf16, #tpu.memory_space<vmem>>, vector<1x32x224xbf16>
    %126 = vector.shape_cast %125 : vector<1x32x224xbf16> to vector<32x224xbf16>
    %c15 = arith.constant 15 : index
    %c0_86 = arith.constant 0 : index
    %c0_87 = arith.constant 0 : index
    %127 = vector.load %arg2[%c15, %c0_86, %c0_87] : memref<27x16x32xbf16, #tpu.memory_space<vmem>>, vector<1x16x32xbf16>
    %128 = vector.shape_cast %127 : vector<1x16x32xbf16> to vector<16x32xbf16>
    %cst_88 = arith.constant dense<0.000000e+00> : vector<16x224xf32>
    %129 = tpu.matmul %128, %126, %cst_88 {dimension_numbers = #tpu.dot_dimension_numbers<[1], [0], [0], [1], [0, 0, 1, 1], [], []>} : vector<16x32xbf16>, vector<32x224xbf16>, vector<16x224xf32> -> vector<16x224xf32>
    %130 = arith.addf %122, %129 : vector<16x224xf32>
    %c1_i32_89 = arith.constant 1 : i32
    %131 = arith.addi %arg0, %c1_i32_89 : i32
    %132 = arith.index_cast %131 : i32 to index
    %c0_90 = arith.constant 0 : index
    %c33_91 = arith.constant 33 : index
    %133 = vector.load %arg1[%132, %c0_90, %c33_91] : memref<8x32x384xbf16, #tpu.memory_space<vmem>>, vector<1x32x224xbf16>
    %134 = vector.shape_cast %133 : vector<1x32x224xbf16> to vector<32x224xbf16>
    %c16_92 = arith.constant 16 : index
    %c0_93 = arith.constant 0 : index
    %c0_94 = arith.constant 0 : index
    %135 = vector.load %arg2[%c16_92, %c0_93, %c0_94] : memref<27x16x32xbf16, #tpu.memory_space<vmem>>, vector<1x16x32xbf16>
    %136 = vector.shape_cast %135 : vector<1x16x32xbf16> to vector<16x32xbf16>
    %cst_95 = arith.constant dense<0.000000e+00> : vector<16x224xf32>
    %137 = tpu.matmul %136, %134, %cst_95 {dimension_numbers = #tpu.dot_dimension_numbers<[1], [0], [0], [1], [0, 0, 1, 1], [], []>} : vector<16x32xbf16>, vector<32x224xbf16>, vector<16x224xf32> -> vector<16x224xf32>
    %138 = arith.addf %130, %137 : vector<16x224xf32>
    %c1_i32_96 = arith.constant 1 : i32
    %139 = arith.addi %arg0, %c1_i32_96 : i32
    %140 = arith.index_cast %139 : i32 to index
    %c0_97 = arith.constant 0 : index
    %c34_98 = arith.constant 34 : index
    %141 = vector.load %arg1[%140, %c0_97, %c34_98] : memref<8x32x384xbf16, #tpu.memory_space<vmem>>, vector<1x32x224xbf16>
    %142 = vector.shape_cast %141 : vector<1x32x224xbf16> to vector<32x224xbf16>
    %c17_99 = arith.constant 17 : index
    %c0_100 = arith.constant 0 : index
    %c0_101 = arith.constant 0 : index
    %143 = vector.load %arg2[%c17_99, %c0_100, %c0_101] : memref<27x16x32xbf16, #tpu.memory_space<vmem>>, vector<1x16x32xbf16>
    %144 = vector.shape_cast %143 : vector<1x16x32xbf16> to vector<16x32xbf16>
    %cst_102 = arith.constant dense<0.000000e+00> : vector<16x224xf32>
    %145 = tpu.matmul %144, %142, %cst_102 {dimension_numbers = #tpu.dot_dimension_numbers<[1], [0], [0], [1], [0, 0, 1, 1], [], []>} : vector<16x32xbf16>, vector<32x224xbf16>, vector<16x224xf32> -> vector<16x224xf32>
    %146 = arith.addf %138, %145 : vector<16x224xf32>
    %c2_i32 = arith.constant 2 : i32
    %147 = arith.addi %arg0, %c2_i32 : i32
    %148 = arith.index_cast %147 : i32 to index
    %c0_103 = arith.constant 0 : index
    %c0_104 = arith.constant 0 : index
    %149 = vector.load %arg1[%148, %c0_103, %c0_104] : memref<8x32x384xbf16, #tpu.memory_space<vmem>>, vector<1x32x224xbf16>
    %150 = vector.shape_cast %149 : vector<1x32x224xbf16> to vector<32x224xbf16>
    %c18_105 = arith.constant 18 : index
    %c0_106 = arith.constant 0 : index
    %c0_107 = arith.constant 0 : index
    %151 = vector.load %arg2[%c18_105, %c0_106, %c0_107] : memref<27x16x32xbf16, #tpu.memory_space<vmem>>, vector<1x16x32xbf16>
    %152 = vector.shape_cast %151 : vector<1x16x32xbf16> to vector<16x32xbf16>
    %cst_108 = arith.constant dense<0.000000e+00> : vector<16x224xf32>
    %153 = tpu.matmul %152, %150, %cst_108 {dimension_numbers = #tpu.dot_dimension_numbers<[1], [0], [0], [1], [0, 0, 1, 1], [], []>} : vector<16x32xbf16>, vector<32x224xbf16>, vector<16x224xf32> -> vector<16x224xf32>
    %154 = arith.addf %146, %153 : vector<16x224xf32>
    %c2_i32_109 = arith.constant 2 : i32
    %155 = arith.addi %arg0, %c2_i32_109 : i32
    %156 = arith.index_cast %155 : i32 to index
    %c0_110 = arith.constant 0 : index
    %c1_111 = arith.constant 1 : index
    %157 = vector.load %arg1[%156, %c0_110, %c1_111] : memref<8x32x384xbf16, #tpu.memory_space<vmem>>, vector<1x32x224xbf16>
    %158 = vector.shape_cast %157 : vector<1x32x224xbf16> to vector<32x224xbf16>
    %c19 = arith.constant 19 : index
    %c0_112 = arith.constant 0 : index
    %c0_113 = arith.constant 0 : index
    %159 = vector.load %arg2[%c19, %c0_112, %c0_113] : memref<27x16x32xbf16, #tpu.memory_space<vmem>>, vector<1x16x32xbf16>
    %160 = vector.shape_cast %159 : vector<1x16x32xbf16> to vector<16x32xbf16>
    %cst_114 = arith.constant dense<0.000000e+00> : vector<16x224xf32>
    %161 = tpu.matmul %160, %158, %cst_114 {dimension_numbers = #tpu.dot_dimension_numbers<[1], [0], [0], [1], [0, 0, 1, 1], [], []>} : vector<16x32xbf16>, vector<32x224xbf16>, vector<16x224xf32> -> vector<16x224xf32>
    %162 = arith.addf %154, %161 : vector<16x224xf32>
    %c2_i32_115 = arith.constant 2 : i32
    %163 = arith.addi %arg0, %c2_i32_115 : i32
    %164 = arith.index_cast %163 : i32 to index
    %c0_116 = arith.constant 0 : index
    %c2_117 = arith.constant 2 : index
    %165 = vector.load %arg1[%164, %c0_116, %c2_117] : memref<8x32x384xbf16, #tpu.memory_space<vmem>>, vector<1x32x224xbf16>
    %166 = vector.shape_cast %165 : vector<1x32x224xbf16> to vector<32x224xbf16>
    %c20 = arith.constant 20 : index
    %c0_118 = arith.constant 0 : index
    %c0_119 = arith.constant 0 : index
    %167 = vector.load %arg2[%c20, %c0_118, %c0_119] : memref<27x16x32xbf16, #tpu.memory_space<vmem>>, vector<1x16x32xbf16>
    %168 = vector.shape_cast %167 : vector<1x16x32xbf16> to vector<16x32xbf16>
    %cst_120 = arith.constant dense<0.000000e+00> : vector<16x224xf32>
    %169 = tpu.matmul %168, %166, %cst_120 {dimension_numbers = #tpu.dot_dimension_numbers<[1], [0], [0], [1], [0, 0, 1, 1], [], []>} : vector<16x32xbf16>, vector<32x224xbf16>, vector<16x224xf32> -> vector<16x224xf32>
    %170 = arith.addf %162, %169 : vector<16x224xf32>
    %c2_i32_121 = arith.constant 2 : i32
    %171 = arith.addi %arg0, %c2_i32_121 : i32
    %172 = arith.index_cast %171 : i32 to index
    %c0_122 = arith.constant 0 : index
    %c16_123 = arith.constant 16 : index
    %173 = vector.load %arg1[%172, %c0_122, %c16_123] : memref<8x32x384xbf16, #tpu.memory_space<vmem>>, vector<1x32x224xbf16>
    %174 = vector.shape_cast %173 : vector<1x32x224xbf16> to vector<32x224xbf16>
    %c21 = arith.constant 21 : index
    %c0_124 = arith.constant 0 : index
    %c0_125 = arith.constant 0 : index
    %175 = vector.load %arg2[%c21, %c0_124, %c0_125] : memref<27x16x32xbf16, #tpu.memory_space<vmem>>, vector<1x16x32xbf16>
    %176 = vector.shape_cast %175 : vector<1x16x32xbf16> to vector<16x32xbf16>
    %cst_126 = arith.constant dense<0.000000e+00> : vector<16x224xf32>
    %177 = tpu.matmul %176, %174, %cst_126 {dimension_numbers = #tpu.dot_dimension_numbers<[1], [0], [0], [1], [0, 0, 1, 1], [], []>} : vector<16x32xbf16>, vector<32x224xbf16>, vector<16x224xf32> -> vector<16x224xf32>
    %178 = arith.addf %170, %177 : vector<16x224xf32>
    %c2_i32_127 = arith.constant 2 : i32
    %179 = arith.addi %arg0, %c2_i32_127 : i32
    %180 = arith.index_cast %179 : i32 to index
    %c0_128 = arith.constant 0 : index
    %c17_129 = arith.constant 17 : index
    %181 = vector.load %arg1[%180, %c0_128, %c17_129] : memref<8x32x384xbf16, #tpu.memory_space<vmem>>, vector<1x32x224xbf16>
    %182 = vector.shape_cast %181 : vector<1x32x224xbf16> to vector<32x224xbf16>
    %c22 = arith.constant 22 : index
    %c0_130 = arith.constant 0 : index
    %c0_131 = arith.constant 0 : index
    %183 = vector.load %arg2[%c22, %c0_130, %c0_131] : memref<27x16x32xbf16, #tpu.memory_space<vmem>>, vector<1x16x32xbf16>
    %184 = vector.shape_cast %183 : vector<1x16x32xbf16> to vector<16x32xbf16>
    %cst_132 = arith.constant dense<0.000000e+00> : vector<16x224xf32>
    %185 = tpu.matmul %184, %182, %cst_132 {dimension_numbers = #tpu.dot_dimension_numbers<[1], [0], [0], [1], [0, 0, 1, 1], [], []>} : vector<16x32xbf16>, vector<32x224xbf16>, vector<16x224xf32> -> vector<16x224xf32>
    %186 = arith.addf %178, %185 : vector<16x224xf32>
    %c2_i32_133 = arith.constant 2 : i32
    %187 = arith.addi %arg0, %c2_i32_133 : i32
    %188 = arith.index_cast %187 : i32 to index
    %c0_134 = arith.constant 0 : index
    %c18_135 = arith.constant 18 : index
    %189 = vector.load %arg1[%188, %c0_134, %c18_135] : memref<8x32x384xbf16, #tpu.memory_space<vmem>>, vector<1x32x224xbf16>
    %190 = vector.shape_cast %189 : vector<1x32x224xbf16> to vector<32x224xbf16>
    %c23 = arith.constant 23 : index
    %c0_136 = arith.constant 0 : index
    %c0_137 = arith.constant 0 : index
    %191 = vector.load %arg2[%c23, %c0_136, %c0_137] : memref<27x16x32xbf16, #tpu.memory_space<vmem>>, vector<1x16x32xbf16>
    %192 = vector.shape_cast %191 : vector<1x16x32xbf16> to vector<16x32xbf16>
    %cst_138 = arith.constant dense<0.000000e+00> : vector<16x224xf32>
    %193 = tpu.matmul %192, %190, %cst_138 {dimension_numbers = #tpu.dot_dimension_numbers<[1], [0], [0], [1], [0, 0, 1, 1], [], []>} : vector<16x32xbf16>, vector<32x224xbf16>, vector<16x224xf32> -> vector<16x224xf32>
    %194 = arith.addf %186, %193 : vector<16x224xf32>
    %c2_i32_139 = arith.constant 2 : i32
    %195 = arith.addi %arg0, %c2_i32_139 : i32
    %196 = arith.index_cast %195 : i32 to index
    %c0_140 = arith.constant 0 : index
    %c32_141 = arith.constant 32 : index
    %197 = vector.load %arg1[%196, %c0_140, %c32_141] : memref<8x32x384xbf16, #tpu.memory_space<vmem>>, vector<1x32x224xbf16>
    %198 = vector.shape_cast %197 : vector<1x32x224xbf16> to vector<32x224xbf16>
    %c24 = arith.constant 24 : index
    %c0_142 = arith.constant 0 : index
    %c0_143 = arith.constant 0 : index
    %199 = vector.load %arg2[%c24, %c0_142, %c0_143] : memref<27x16x32xbf16, #tpu.memory_space<vmem>>, vector<1x16x32xbf16>
    %200 = vector.shape_cast %199 : vector<1x16x32xbf16> to vector<16x32xbf16>
    %cst_144 = arith.constant dense<0.000000e+00> : vector<16x224xf32>
    %201 = tpu.matmul %200, %198, %cst_144 {dimension_numbers = #tpu.dot_dimension_numbers<[1], [0], [0], [1], [0, 0, 1, 1], [], []>} : vector<16x32xbf16>, vector<32x224xbf16>, vector<16x224xf32> -> vector<16x224xf32>
    %202 = arith.addf %194, %201 : vector<16x224xf32>
    %c2_i32_145 = arith.constant 2 : i32
    %203 = arith.addi %arg0, %c2_i32_145 : i32
    %204 = arith.index_cast %203 : i32 to index
    %c0_146 = arith.constant 0 : index
    %c33_147 = arith.constant 33 : index
    %205 = vector.load %arg1[%204, %c0_146, %c33_147] : memref<8x32x384xbf16, #tpu.memory_space<vmem>>, vector<1x32x224xbf16>
    %206 = vector.shape_cast %205 : vector<1x32x224xbf16> to vector<32x224xbf16>
    %c25 = arith.constant 25 : index
    %c0_148 = arith.constant 0 : index
    %c0_149 = arith.constant 0 : index
    %207 = vector.load %arg2[%c25, %c0_148, %c0_149] : memref<27x16x32xbf16, #tpu.memory_space<vmem>>, vector<1x16x32xbf16>
    %208 = vector.shape_cast %207 : vector<1x16x32xbf16> to vector<16x32xbf16>
    %cst_150 = arith.constant dense<0.000000e+00> : vector<16x224xf32>
    %209 = tpu.matmul %208, %206, %cst_150 {dimension_numbers = #tpu.dot_dimension_numbers<[1], [0], [0], [1], [0, 0, 1, 1], [], []>} : vector<16x32xbf16>, vector<32x224xbf16>, vector<16x224xf32> -> vector<16x224xf32>
    %210 = arith.addf %202, %209 : vector<16x224xf32>
    %c2_i32_151 = arith.constant 2 : i32
    %211 = arith.addi %arg0, %c2_i32_151 : i32
    %212 = arith.index_cast %211 : i32 to index
    %c0_152 = arith.constant 0 : index
    %c34_153 = arith.constant 34 : index
    %213 = vector.load %arg1[%212, %c0_152, %c34_153] : memref<8x32x384xbf16, #tpu.memory_space<vmem>>, vector<1x32x224xbf16>
    %214 = vector.shape_cast %213 : vector<1x32x224xbf16> to vector<32x224xbf16>
    %c26 = arith.constant 26 : index
    %c0_154 = arith.constant 0 : index
    %c0_155 = arith.constant 0 : index
    %215 = vector.load %arg2[%c26, %c0_154, %c0_155] : memref<27x16x32xbf16, #tpu.memory_space<vmem>>, vector<1x16x32xbf16>
    %216 = vector.shape_cast %215 : vector<1x16x32xbf16> to vector<16x32xbf16>
    %cst_156 = arith.constant dense<0.000000e+00> : vector<16x224xf32>
    %217 = tpu.matmul %216, %214, %cst_156 {dimension_numbers = #tpu.dot_dimension_numbers<[1], [0], [0], [1], [0, 0, 1, 1], [], []>} : vector<16x32xbf16>, vector<32x224xbf16>, vector<16x224xf32> -> vector<16x224xf32>
    %218 = arith.addf %210, %217 : vector<16x224xf32>
    %219 = vector.shape_cast %218 : vector<16x224xf32> to vector<1x16x224xf32>
    %c0_157 = arith.constant 0 : index
    %c0_158 = arith.constant 0 : index
    %c0_159 = arith.constant 0 : index
    %220 = vector.load %arg4[%c0_157, %c0_158, %c0_159] : memref<1x16x224xf32, #tpu.memory_space<vmem>>, vector<1x16x224xf32>
    tpu.vector_store %arg4[%c0_157, %c0_158, %c0_159], %219 {strides = array<i32>} : memref<1x16x224xf32, #tpu.memory_space<vmem>>, vector<1x16x224xf32>,
    return
  }
  func.func @transform_0(%arg0: i32) -> (i32, i32, i32) {
    %c0_i32 = arith.constant 0 : i32
    %c0_i32_0 = arith.constant 0 : i32
    %c0_i32_1 = arith.constant 0 : i32
    %c0_i32_2 = arith.constant 0 : i32
    return %c0_i32, %c0_i32_0, %c0_i32_1 : i32, i32, i32
  }
  func.func @transform_1(%arg0: i32) -> (i32, i32, i32) {
    %c0_i32 = arith.constant 0 : i32
    %c0_i32_0 = arith.constant 0 : i32
    %c0_i32_1 = arith.constant 0 : i32
    %c0_i32_2 = arith.constant 0 : i32
    return %c0_i32, %c0_i32_0, %c0_i32_1 : i32, i32, i32
  }
  func.func @transform_2(%arg0: i32) -> (i32, i32) {
    %c0_i32 = arith.constant 0 : i32
    %c0_i32_0 = arith.constant 0 : i32
    %c0_i32_1 = arith.constant 0 : i32
    return %c0_i32, %c0_i32_0 : i32, i32
  }
  func.func @transform_3(%arg0: i32) -> (i32, i32, i32) {
    %c0_i32 = arith.constant 0 : i32
    %c0_i32_0 = arith.constant 0 : i32
    %c0_i32_1 = arith.constant 0 : i32
    return %arg0, %c0_i32, %c0_i32_0 : i32, i32, i32
  }
}

</mosaic_0001>

<llo_original>
// kernel: conv3d_pallas.1
$region0: #{conv3d_pallas.1}
  #allocation0 [shape = 'u32[]', space=smem, size = 0x4, offset = 0x4, fixed_abs, tag = 'smem constant byte address 0x4 - core index']
  #allocation1 [shape = 'u32[144,128]{1,0:T(1,128)}', space=vmem, size = 0x12000, scoped, tag = 'internal scratch']
  %s0 = inlined_call_operand.vmem [shape: bf16[8,32,384], index: 0, kind: input, shape index: {}]
  %s1 = inlined_call_operand.vmem [shape: bf16[27,16,32], index: 1, kind: input, shape index: {}]
  %s2 = inlined_call_operand.vmem [shape: f32[16,1], index: 2, kind: input, shape index: {}]
  %s3 = inlined_call_operand.vmem [shape: f32[6,16,224], index: 3, kind: output, shape index: {}]
  %s4 = sld [smem:[#allocation0]]
  $region45: #{conv3d_pallas.1} parent=0
    _
  %s6 = ssub.s32 1, %s4
  %s7 = scalar_select 0, %s6, %s4
  loop: start=0, step=1, limit=8
  $region2: #{conv3d_pallas.1} parent=0 // loop_pre_header
    _
  $region3: #{conv3d_pallas.1} parent=0 // loop_header
    %s9 = sphi 0, %s13
    %p10 = scmp.ge.s32.totalorder %s9, 8
    %s17 = sphi 0, %s17
    %s19 = sphi 0, %s17
    %s20 = sphi 0, %s19
    %s34 = sphi 0, %s20
    %s38 = sphi 0, %s38
    %s40 = sphi 0, %s38
    %s41 = sphi 0, %s40
    %s55 = sphi 0, %s41
    %s59 = sphi 0, %s59
    %s61 = sphi 0, %s59
    %s62 = sphi 0, %s61
    %s76 = sphi 0, %s62
    %s82 = sphi 0, %s84
    %s85 = sphi 0, %s82
    %s86 = sphi 0, %s85
    %s102 = sphi 0, %s86
  $region4: #{conv3d_pallas.1} parent=0 // loop_header_branch
    %12 = sbr.rel (%p10) target = $region8
  $region5: #{conv3d_pallas.1} parent=0 // loop_body
    %s14 = ssub.s32 %s9, 1
    %s15 = ssub.s32 %s9, 2
    %s16 = sadd.s32 %s9, 1
    %s18 = sadd.s32 %s17, 1
    %p21 = scmp.eq.s32.totalorder %s9, 5
    %p22 = scmp.ne.s32.totalorder %s17, %s19
    %p23 = scmp.eq.s32.totalorder %s9, 0
    %p24 = por %p22, %p23
    %p25 = scmp.ne.s32.totalorder %s17, %s19
    %p26 = scmp.eq.s32.totalorder %s14, 5
    %p27 = por %p25, %p26
    %p28 = scmp.ne.s32.totalorder %s19, %s20
    %p29 = scmp.eq.s32.totalorder %s14, 0
    %p30 = por %p28, %p29
    %p31 = scmp.ne.s32.totalorder %s19, %s20
    %p32 = scmp.eq.s32.totalorder %s15, 5
    %p33 = por %p31, %p32
    %p35 = scmp.ne.s32.totalorder %s20, %s34
    %p36 = scmp.eq.s32.totalorder %s15, 0
    %p37 = por %p35, %p36
    %s39 = sadd.s32 %s38, 1
    %p42 = scmp.eq.s32.totalorder %s9, 5
    %p43 = scmp.ne.s32.totalorder %s38, %s40
    %p44 = scmp.eq.s32.totalorder %s9, 0
    %p45 = por %p43, %p44
    %p46 = scmp.ne.s32.totalorder %s38, %s40
    %p47 = scmp.eq.s32.totalorder %s14, 5
    %p48 = por %p46, %p47
    %p49 = scmp.ne.s32.totalorder %s40, %s41
    %p50 = scmp.eq.s32.totalorder %s14, 0
    %p51 = por %p49, %p50
    %p52 = scmp.ne.s32.totalorder %s40, %s41
    %p53 = scmp.eq.s32.totalorder %s15, 5
    %p54 = por %p52, %p53
    %p56 = scmp.ne.s32.totalorder %s41, %s55
    %p57 = scmp.eq.s32.totalorder %s15, 0
    %p58 = por %p56, %p57
    %s60 = sadd.s32 %s59, 1
    %p63 = scmp.eq.s32.totalorder %s9, 5
    %p64 = scmp.ne.s32.totalorder %s59, %s61
    %p65 = scmp.eq.s32.totalorder %s9, 0
    %p66 = por %p64, %p65
    %p67 = scmp.ne.s32.totalorder %s59, %s61
    %p68 = scmp.eq.s32.totalorder %s14, 5
    %p69 = por %p67, %p68
    %p70 = scmp.ne.s32.totalorder %s61, %s62
    %p71 = scmp.eq.s32.totalorder %s14, 0
    %p72 = por %p70, %p71
    %p73 = scmp.ne.s32.totalorder %s61, %s62
    %p74 = scmp.eq.s32.totalorder %s15, 5
    %p75 = por %p73, %p74
    %p77 = scmp.ne.s32.totalorder %s62, %s76
    %p78 = scmp.eq.s32.totalorder %s15, 0
    %p79 = por %p77, %p78
    %s80 = ssub.s32 %s9, %s16
    %p81 = scmp.eq.s32.totalorder %s80, 0
    %s83 = sadd.s32 %s82, 1
    %s84 = scalar_select %p81, %s82, %s83
    %p87 = pneg %p81
    %p88 = scmp.eq.s32.totalorder %s9, 5
    %p89 = por %p87, %p88
    %p90 = scmp.ne.s32.totalorder %s82, %s85
    %p91 = scmp.eq.s32.totalorder %s9, 0
    %p92 = por %p90, %p91
    %p93 = scmp.ne.s32.totalorder %s82, %s85
    %p94 = scmp.eq.s32.totalorder %s14, 5
    %p95 = por %p93, %p94
    %p96 = scmp.ne.s32.totalorder %s85, %s86
    %p97 = scmp.eq.s32.totalorder %s14, 0
    %p98 = por %p96, %p97
    %p99 = scmp.ne.s32.totalorder %s85, %s86
    %p100 = scmp.eq.s32.totalorder %s15, 5
    %p101 = por %p99, %p100
    %p103 = scmp.ne.s32.totalorder %s86, %s102
    %p104 = scmp.eq.s32.totalorder %s15, 0
    %p105 = por %p103, %p104
    %p106 = scmp.le.s32.totalorder 1, %s9
    %p107 = scmp.lt.s32.totalorder %s9, 7
    %p108 = pnand %p106, %p107
    %p109 = pneg %p108
    // Predicated region
    $region9: #{conv3d_pallas.1} parent=5 // pred_check
      _
    $region10: #{conv3d_pallas.1} parent=5 // pred_check_branch
      %111 = sbr.rel (%p108) target = $region12
    $region11: #{conv3d_pallas.1} parent=5 // pred_region
      %s112 = ssub.s32 %s9, 1
      // Predicated region
      $region13: #{conv3d_pallas.1} parent=11 // pred_check
        %p113 = pneg %p30
      $region14: #{conv3d_pallas.1} parent=11 // pred_check_branch
        %115 = sbr.rel (%p113) target = $region16
      $region15: #{conv3d_pallas.1} parent=11 // pred_region
        _
      $region16: #{conv3d_pallas.1} parent=11 // pred_fallthru
        _
      // Predicated region
      $region17: #{conv3d_pallas.1} parent=11 // pred_check
        %p116 = pneg %p51
      $region18: #{conv3d_pallas.1} parent=11 // pred_check_branch
        %118 = sbr.rel (%p116) target = $region20
      $region19: #{conv3d_pallas.1} parent=11 // pred_region
        _
      $region20: #{conv3d_pallas.1} parent=11 // pred_fallthru
        _
      // Predicated region
      $region21: #{conv3d_pallas.1} parent=11 // pred_check
        %p119 = pneg %p72
      $region22: #{conv3d_pallas.1} parent=11 // pred_check_branch
        %121 = sbr.rel (%p119) target = $region24
      $region23: #{conv3d_pallas.1} parent=11 // pred_region
        _
      $region24: #{conv3d_pallas.1} parent=11 // pred_fallthru
        _
    $region12: #{conv3d_pallas.1} parent=5 // pred_fallthru
      _
    %p122 = scmp.lt.s32.totalorder %s9, 6
    // Predicated region
    $region25: #{conv3d_pallas.1} parent=5 // pred_check
      %p123 = pneg %p122
    $region26: #{conv3d_pallas.1} parent=5 // pred_check_branch
      %125 = sbr.rel (%p123) target = $region28
    $region27: #{conv3d_pallas.1} parent=5 // pred_region
      _
    $region28: #{conv3d_pallas.1} parent=5 // pred_fallthru
      _
    %p126 = scmp.le.s32.totalorder 1, %s9
    %p127 = scmp.lt.s32.totalorder %s9, 7
    %p128 = pnand %p126, %p127
    %p129 = pneg %p128
    // Predicated region
    $region29: #{conv3d_pallas.1} parent=5 // pred_check
      _
    $region30: #{conv3d_pallas.1} parent=5 // pred_check_branch
      %131 = sbr.rel (%p128) target = $region32
    $region31: #{conv3d_pallas.1} parent=5 // pred_region
      %s132 = ssub.s32 %s9, 1
      %p133 = pneg %p30
      %p134 = pneg %p27
      %p135 = pneg %p51
      %p136 = pneg %p48
      %p137 = pneg %p72
      %p138 = pneg %p69
      %p139 = pneg %p98
      %p140 = pneg %p95
      %p141 = scmp.lt.s32.totalorder %s14, 5
      %s142 = scalar_select %p141, %s14, 5
      %s143 = smul.addr %s142, 4
      %s144 = smul.addr %s143, 8
      %s145 = scalar_lea.vmem %s3, %s144
      %p146 = scmp.lt.s32.totalorder %s14, 5
      %s147 = scalar_select %p146, %s14, 5
      %s148 = smul.addr %s147, 4
      %s149 = smul.addr %s148, 8
      %s150 = scalar_lea.vmem %s3, %s149
      %v152 = vld [vmem:[%s2] sm:$0xff]
      %v153 = vld [vmem:[%s2 + $0x8] sm:$0xff]
      %155 = vset.pattern.permute.xlu0 0
      %156 = vperm.xlu0 %155, %v152
      %v157 = vpop.permute.xlu0 %156
      %160 = vset.pattern.permute.xlu0 0
      %161 = vperm.xlu0 %160, %v153
      %v162 = vpop.permute.xlu0 %161
      %s164 = smul.u32 %s14, 12
      %s165 = smul.addr %s164, 4
      %s166 = scalar_lea.vmem %s0, %s165
      %v167 = vld [vmem:[%s166] sm:$0xff]
      %v168 = vld [vmem:[%s166 + $0xc] sm:$0xff]
      %v169 = vld [vmem:[%s166 + $0x18] sm:$0xff]
      %v170 = vld [vmem:[%s166 + $0x24] sm:$0xff]
      %v171 = vld [vmem:[%s1] sm:$0xf]
      %v172 = vld [vmem:[%s1 + $0x4] sm:$0xf]
      %v175 = vunpack.c.l.b16 %v171
      %v176 = vunpack.c.l.b16 %v172
      %v177 = vpack.c.b16 %v176, %v175
      %v182 = vunpack.c.l.b16 %v167
      %v183 = vunpack.c.h.b16 %v167
      %v184 = vunpack.c.l.b16 %v168
      %v185 = vunpack.c.h.b16 %v168
      %v186 = vunpack.c.l.b16 %v169
      %v187 = vunpack.c.h.b16 %v169
      %v188 = vunpack.c.l.b16 %v170
      %v189 = vunpack.c.h.b16 %v170
      %v190 = vpack.c.b16 %v184, %v182
      %v191 = vpack.c.b16 %v185, %v183
      %v192 = vpack.c.b16 %v188, %v186
      %v193 = vpack.c.b16 %v189, %v187
      %vm198 = vcmask 261120
      %v200 = vsel %vm198, %v177, 0
      %202 = vmatprep.subr.bf16.mxu0 %v191
      %203 = vmatpush1.bf16.msra.mxu0 %v190
      %204 = vmatprep.subr.bf16.mxu0 %v193
      %205 = vmatpush1.bf16.msra.mxu0 %v192
      %206 = vmatprep.subr.bf16.mxu0 0
      %207 = vmatpush1.bf16.msra.mxu0 0
      %208 = vmatprep.subr.bf16.mxu0 0
      %209 = vmatpush1.bf16.msra.mxu0 0
      %210 = vmatprep.subr.bf16.mxu0 0
      %211 = vmatpush1.bf16.msra.mxu0 0
      %212 = vmatprep.subr.bf16.mxu0 0
      %213 = vmatpush1.bf16.msra.mxu0 0
      %214 = vmatprep.subr.bf16.mxu0 0
      %215 = vmatpush1.bf16.msra.mxu0 0
      %216 = vmatprep.subr.bf16.mxu0 0
      %217 = vmatpush1.bf16.msra.mxu0 0
      %218 = vmatprep.subr.bf16.mxu0 0
      %219 = vmatpush1.bf16.msra.mxu0 0
      %220 = vmatprep.subr.bf16.mxu0 0
      %221 = vmatpush1.bf16.msra.mxu0 0
      %222 = vmatprep.subr.bf16.mxu0 0
      %223 = vmatpush1.bf16.msra.mxu0 0
      %224 = vmatprep.subr.bf16.mxu0 0
      %225 = vmatpush1.bf16.msra.mxu0 0
      %226 = vmatprep.subr.bf16.mxu0 0
      %227 = vmatpush1.bf16.msra.mxu0 0
      %228 = vmatprep.subr.bf16.mxu0 0
      %229 = vmatpush1.bf16.msra.mxu0 0
      %230 = vmatprep.subr.bf16.mxu0 0
      %231 = vmatpush1.bf16.msra.mxu0 0
      %232 = vmatprep.subr.bf16.mxu0 0
      %233 = vmatpush1.bf16.msra.mxu0 0
      %234 = vmatprep.mubr.bf16.mxu0 0
      %235 = vmatmul.mubr.bf16.gmra.mrb[0].mxu0 %v200
      %v236 = vpop.f32.mrb[0].mxu0
      %v237 = vadd.f32 0.0, %v236
      %v238 = vpop.f32.mrb[0].mxu0
      %v239 = vadd.f32 0.0, %v238
      %v240 = vpop.f32.mrb[0].mxu0
      %v241 = vadd.f32 0.0, %v240
      %v242 = vpop.f32.mrb[0].mxu0
      %v243 = vadd.f32 0.0, %v242
      %244 = vdwg.mxu0
      %v245 = vadd.f32 %v157, %v237
      %v246 = vadd.f32 %v157, %v239
      %v247 = vadd.f32 %v162, %v241
      %v248 = vadd.f32 %v162, %v243
      %s249 = scalar_lea.vmem %s1, 8
      %v250 = vld [vmem:[%s249] sm:$0xf]
      %v251 = vld [vmem:[%s249 + $0x4] sm:$0xf]
      %v254 = vunpack.c.l.b16 %v250
      %v255 = vunpack.c.l.b16 %v251
      %v256 = vpack.c.b16 %v255, %v254
      %257 = vrot.lane.b32.xlu0 %v190, 127
      %v258 = vpop.permute.xlu0 %257
      %259 = vrot.lane.b32.xlu0 %v191, 127
      %v260 = vpop.permute.xlu0 %259
      %261 = vrot.lane.b32.xlu0 %v192, 127
      %v262 = vpop.permute.xlu0 %261
      %263 = vrot.lane.b32.xlu0 %v193, 127
      %v264 = vpop.permute.xlu0 %263
      %vm265 = vcmask 1039360
      %v266 = vsel %vm265, %v258, %v260
      %v267 = vsel %vm265, %v262, %v264
      %v273 = vsel %vm198, %v256, 0
      %275 = vmatprep.subr.bf16.mxu0 %v260
      %276 = vmatpush1.bf16.msra.mxu0 %v266
      %277 = vmatprep.subr.bf16.mxu0 %v264
      %278 = vmatpush1.bf16.msra.mxu0 %v267
      %279 = vmatprep.subr.bf16.mxu0 0
      %280 = vmatpush1.bf16.msra.mxu0 0
      %281 = vmatprep.subr.bf16.mxu0 0
      %282 = vmatpush1.bf16.msra.mxu0 0
      %283 = vmatprep.subr.bf16.mxu0 0
      %284 = vmatpush1.bf16.msra.mxu0 0
      %285 = vmatprep.subr.bf16.mxu0 0
      %286 = vmatpush1.bf16.msra.mxu0 0
      %287 = vmatprep.subr.bf16.mxu0 0
      %288 = vmatpush1.bf16.msra.mxu0 0
      %289 = vmatprep.subr.bf16.mxu0 0
      %290 = vmatpush1.bf16.msra.mxu0 0
      %291 = vmatprep.subr.bf16.mxu0 0
      %292 = vmatpush1.bf16.msra.mxu0 0
      %293 = vmatprep.subr.bf16.mxu0 0
      %294 = vmatpush1.bf16.msra.mxu0 0
      %295 = vmatprep.subr.bf16.mxu0 0
      %296 = vmatpush1.bf16.msra.mxu0 0
      %297 = vmatprep.subr.bf16.mxu0 0
      %298 = vmatpush1.bf16.msra.mxu0 0
      %299 = vmatprep.subr.bf16.mxu0 0
      %300 = vmatpush1.bf16.msra.mxu0 0
      %301 = vmatprep.subr.bf16.mxu0 0
      %302 = vmatpush1.bf16.msra.mxu0 0
      %303 = vmatprep.subr.bf16.mxu0 0
      %304 = vmatpush1.bf16.msra.mxu0 0
      %305 = vmatprep.subr.bf16.mxu0 0
      %306 = vmatpush1.bf16.msra.mxu0 0
      %307 = vmatprep.mubr.bf16.mxu0 0
      %308 = vmatmul.mubr.bf16.gmra.mrb[0].mxu0 %v273
      %v309 = vpop.f32.mrb[0].mxu0
      %v310 = vadd.f32 0.0, %v309
      %v311 = vpop.f32.mrb[0].mxu0
      %v312 = vadd.f32 0.0, %v311
      %v313 = vpop.f32.mrb[0].mxu0
      %v314 = vadd.f32 0.0, %v313
      %v315 = vpop.f32.mrb[0].mxu0
      %v316 = vadd.f32 0.0, %v315
      %317 = vdwg.mxu0
      %v318 = vadd.f32 %v245, %v310
      %v319 = vadd.f32 %v246, %v312
      %v320 = vadd.f32 %v247, %v314
      %v321 = vadd.f32 %v248, %v316
      %s322 = scalar_lea.vmem %s1, 16
      %v323 = vld [vmem:[%s322] sm:$0xf]
      %v324 = vld [vmem:[%s322 + $0x4] sm:$0xf]
      %v327 = vunpack.c.l.b16 %v323
      %v328 = vunpack.c.l.b16 %v324
      %v329 = vpack.c.b16 %v328, %v327
      %330 = vrot.lane.b32.xlu0 %v190, 126
      %v331 = vpop.permute.xlu0 %330
      %332 = vrot.lane.b32.xlu0 %v191, 126
      %v333 = vpop.permute.xlu0 %332
      %334 = vrot.lane.b32.xlu0 %v192, 126
      %v335 = vpop.permute.xlu0 %334
      %336 = vrot.lane.b32.xlu0 %v193, 126
      %v337 = vpop.permute.xlu0 %336
      %vm338 = vcmask 1031168
      %v339 = vsel %vm338, %v331, %v333
      %v340 = vsel %vm338, %v335, %v337
      %v346 = vsel %vm198, %v329, 0
      %348 = vmatprep.subr.bf16.mxu0 %v333
      %349 = vmatpush1.bf16.msra.mxu0 %v339
      %350 = vmatprep.subr.bf16.mxu0 %v337
      %351 = vmatpush1.bf16.msra.mxu0 %v340
      %352 = vmatprep.subr.bf16.mxu0 0
      %353 = vmatpush1.bf16.msra.mxu0 0
      %354 = vmatprep.subr.bf16.mxu0 0
      %355 = vmatpush1.bf16.msra.mxu0 0
      %356 = vmatprep.subr.bf16.mxu0 0
      %357 = vmatpush1.bf16.msra.mxu0 0
      %358 = vmatprep.subr.bf16.mxu0 0
      %359 = vmatpush1.bf16.msra.mxu0 0
      %360 = vmatprep.subr.bf16.mxu0 0
      %361 = vmatpush1.bf16.msra.mxu0 0
      %362 = vmatprep.subr.bf16.mxu0 0
      %363 = vmatpush1.bf16.msra.mxu0 0
      %364 = vmatprep.subr.bf16.mxu0 0
      %365 = vmatpush1.bf16.msra.mxu0 0
      %366 = vmatprep.subr.bf16.mxu0 0
      %367 = vmatpush1.bf16.msra.mxu0 0
      %368 = vmatprep.subr.bf16.mxu0 0
      %369 = vmatpush1.bf16.msra.mxu0 0
      %370 = vmatprep.subr.bf16.mxu0 0
      %371 = vmatpush1.bf16.msra.mxu0 0
      %372 = vmatprep.subr.bf16.mxu0 0
      %373 = vmatpush1.bf16.msra.mxu0 0
      %374 = vmatprep.subr.bf16.mxu0 0
      %375 = vmatpush1.bf16.msra.mxu0 0
      %376 = vmatprep.subr.bf16.mxu0 0
      %377 = vmatpush1.bf16.msra.mxu0 0
      %378 = vmatprep.subr.bf16.mxu0 0
      %379 = vmatpush1.bf16.msra.mxu0 0
      %380 = vmatprep.mubr.bf16.mxu0 0
      %381 = vmatmul.mubr.bf16.gmra.mrb[0].mxu0 %v346
      %v382 = vpop.f32.mrb[0].mxu0
      %v383 = vadd.f32 0.0, %v382
      %v384 = vpop.f32.mrb[0].mxu0
      %v385 = vadd.f32 0.0, %v384
      %v386 = vpop.f32.mrb[0].mxu0
      %v387 = vadd.f32 0.0, %v386
      %v388 = vpop.f32.mrb[0].mxu0
      %v389 = vadd.f32 0.0, %v388
      %390 = vdwg.mxu0
      %v391 = vadd.f32 %v318, %v383
      %v392 = vadd.f32 %v319, %v385
      %v393 = vadd.f32 %v320, %v387
      %v394 = vadd.f32 %v321, %v389
      %s395 = scalar_lea.vmem %s1, 24
      %v396 = vld [vmem:[%s395] sm:$0xf]
      %v397 = vld [vmem:[%s395 + $0x4] sm:$0xf]
      %v400 = vunpack.c.l.b16 %v396
      %v401 = vunpack.c.l.b16 %v397
      %v402 = vpack.c.b16 %v401, %v400
      %403 = vrot.lane.b32.xlu0 %v190, 112
      %v404 = vpop.permute.xlu0 %403
      %405 = vrot.lane.b32.xlu0 %v191, 112
      %v406 = vpop.permute.xlu0 %405
      %407 = vrot.lane.b32.xlu0 %v192, 112
      %v408 = vpop.permute.xlu0 %407
      %409 = vrot.lane.b32.xlu0 %v193, 112
      %v410 = vpop.permute.xlu0 %409
      %vm411 = vcmask 916480
      %v412 = vsel %vm411, %v404, %v406
      %v413 = vsel %vm411, %v408, %v410
      %v419 = vsel %vm198, %v402, 0
      %421 = vmatprep.subr.bf16.mxu0 %v406
      %422 = vmatpush1.bf16.msra.mxu0 %v412
      %423 = vmatprep.subr.bf16.mxu0 %v410
      %424 = vmatpush1.bf16.msra.mxu0 %v413
      %425 = vmatprep.subr.bf16.mxu0 0
      %426 = vmatpush1.bf16.msra.mxu0 0
      %427 = vmatprep.subr.bf16.mxu0 0
      %428 = vmatpush1.bf16.msra.mxu0 0
      %429 = vmatprep.subr.bf16.mxu0 0
      %430 = vmatpush1.bf16.msra.mxu0 0
      %431 = vmatprep.subr.bf16.mxu0 0
      %432 = vmatpush1.bf16.msra.mxu0 0
      %433 = vmatprep.subr.bf16.mxu0 0
      %434 = vmatpush1.bf16.msra.mxu0 0
      %435 = vmatprep.subr.bf16.mxu0 0
      %436 = vmatpush1.bf16.msra.mxu0 0
      %437 = vmatprep.subr.bf16.mxu0 0
      %438 = vmatpush1.bf16.msra.mxu0 0
      %439 = vmatprep.subr.bf16.mxu0 0
      %440 = vmatpush1.bf16.msra.mxu0 0
      %441 = vmatprep.subr.bf16.mxu0 0
      %442 = vmatpush1.bf16.msra.mxu0 0
      %443 = vmatprep.subr.bf16.mxu0 0
      %444 = vmatpush1.bf16.msra.mxu0 0
      %445 = vmatprep.subr.bf16.mxu0 0
      %446 = vmatpush1.bf16.msra.mxu0 0
      %447 = vmatprep.subr.bf16.mxu0 0
      %448 = vmatpush1.bf16.msra.mxu0 0
      %449 = vmatprep.subr.bf16.mxu0 0
      %450 = vmatpush1.bf16.msra.mxu0 0
      %451 = vmatprep.subr.bf16.mxu0 0
      %452 = vmatpush1.bf16.msra.mxu0 0
      %453 = vmatprep.mubr.bf16.mxu0 0
      %454 = vmatmul.mubr.bf16.gmra.mrb[0].mxu0 %v419
      %v455 = vpop.f32.mrb[0].mxu0
      %v456 = vadd.f32 0.0, %v455
      %v457 = vpop.f32.mrb[0].mxu0
      %v458 = vadd.f32 0.0, %v457
      %v459 = vpop.f32.mrb[0].mxu0
      %v460 = vadd.f32 0.0, %v459
      %v461 = vpop.f32.mrb[0].mxu0
      %v462 = vadd.f32 0.0, %v461
      %463 = vdwg.mxu0
      %v464 = vadd.f32 %v391, %v456
      %v465 = vadd.f32 %v392, %v458
      %v466 = vadd.f32 %v393, %v460
      %v467 = vadd.f32 %v394, %v462
      %s468 = scalar_lea.vmem %s1, 32
      %v469 = vld [vmem:[%s468] sm:$0xf]
      %v470 = vld [vmem:[%s468 + $0x4] sm:$0xf]
      %v473 = vunpack.c.l.b16 %v469
      %v474 = vunpack.c.l.b16 %v470
      %v475 = vpack.c.b16 %v474, %v473
      %476 = vrot.lane.b32.xlu0 %v190, 111
      %v477 = vpop.permute.xlu0 %476
      %478 = vrot.lane.b32.xlu0 %v191, 111
      %v479 = vpop.permute.xlu0 %478
      %480 = vrot.lane.b32.xlu0 %v192, 111
      %v481 = vpop.permute.xlu0 %480
      %482 = vrot.lane.b32.xlu0 %v193, 111
      %v483 = vpop.permute.xlu0 %482
      %vm484 = vcmask 908288
      %v485 = vsel %vm484, %v477, %v479
      %v486 = vsel %vm484, %v481, %v483
      %v492 = vsel %vm198, %v475, 0
      %494 = vmatprep.subr.bf16.mxu0 %v479
      %495 = vmatpush1.bf16.msra.mxu0 %v485
      %496 = vmatprep.subr.bf16.mxu0 %v483
      %497 = vmatpush1.bf16.msra.mxu0 %v486
      %498 = vmatprep.subr.bf16.mxu0 0
      %499 = vmatpush1.bf16.msra.mxu0 0
      %500 = vmatprep.subr.bf16.mxu0 0
      %501 = vmatpush1.bf16.msra.mxu0 0
      %502 = vmatprep.subr.bf16.mxu0 0
      %503 = vmatpush1.bf16.msra.mxu0 0
      %504 = vmatprep.subr.bf16.mxu0 0
      %505 = vmatpush1.bf16.msra.mxu0 0
      %506 = vmatprep.subr.bf16.mxu0 0
      %507 = vmatpush1.bf16.msra.mxu0 0
      %508 = vmatprep.subr.bf16.mxu0 0
      %509 = vmatpush1.bf16.msra.mxu0 0
      %510 = vmatprep.subr.bf16.mxu0 0
      %511 = vmatpush1.bf16.msra.mxu0 0
      %512 = vmatprep.subr.bf16.mxu0 0
      %513 = vmatpush1.bf16.msra.mxu0 0
      %514 = vmatprep.subr.bf16.mxu0 0
      %515 = vmatpush1.bf16.msra.mxu0 0
      %516 = vmatprep.subr.bf16.mxu0 0
      %517 = vmatpush1.bf16.msra.mxu0 0
      %518 = vmatprep.subr.bf16.mxu0 0
      %519 = vmatpush1.bf16.msra.mxu0 0
      %520 = vmatprep.subr.bf16.mxu0 0
      %521 = vmatpush1.bf16.msra.mxu0 0
      %522 = vmatprep.subr.bf16.mxu0 0
      %523 = vmatpush1.bf16.msra.mxu0 0
      %524 = vmatprep.subr.bf16.mxu0 0
      %525 = vmatpush1.bf16.msra.mxu0 0
      %526 = vmatprep.mubr.bf16.mxu0 0
      %527 = vmatmul.mubr.bf16.gmra.mrb[0].mxu0 %v492
      %v528 = vpop.f32.mrb[0].mxu0
      %v529 = vadd.f32 0.0, %v528
      %v530 = vpop.f32.mrb[0].mxu0
      %v531 = vadd.f32 0.0, %v530
      %v532 = vpop.f32.mrb[0].mxu0
      %v533 = vadd.f32 0.0, %v532
      %v534 = vpop.f32.mrb[0].mxu0
      %v535 = vadd.f32 0.0, %v534
      %536 = vdwg.mxu0
      %v537 = vadd.f32 %v464, %v529
      %v538 = vadd.f32 %v465, %v531
      %v539 = vadd.f32 %v466, %v533
      %v540 = vadd.f32 %v467, %v535
      %s541 = scalar_lea.vmem %s1, 40
      %v542 = vld [vmem:[%s541] sm:$0xf]
      %v543 = vld [vmem:[%s541 + $0x4] sm:$0xf]
      %v546 = vunpack.c.l.b16 %v542
      %v547 = vunpack.c.l.b16 %v543
      %v548 = vpack.c.b16 %v547, %v546
      %549 = vrot.lane.b32.xlu0 %v190, 110
      %v550 = vpop.permute.xlu0 %549
      %551 = vrot.lane.b32.xlu0 %v191, 110
      %v552 = vpop.permute.xlu0 %551
      %553 = vrot.lane.b32.xlu0 %v192, 110
      %v554 = vpop.permute.xlu0 %553
      %555 = vrot.lane.b32.xlu0 %v193, 110
      %v556 = vpop.permute.xlu0 %555
      %vm557 = vcmask 900096
      %v558 = vsel %vm557, %v550, %v552
      %v559 = vsel %vm557, %v554, %v556
      %v565 = vsel %vm198, %v548, 0
      %567 = vmatprep.subr.bf16.mxu0 %v552
      %568 = vmatpush1.bf16.msra.mxu0 %v558
      %569 = vmatprep.subr.bf16.mxu0 %v556
      %570 = vmatpush1.bf16.msra.mxu0 %v559
      %571 = vmatprep.subr.bf16.mxu0 0
      %572 = vmatpush1.bf16.msra.mxu0 0
      %573 = vmatprep.subr.bf16.mxu0 0
      %574 = vmatpush1.bf16.msra.mxu0 0
      %575 = vmatprep.subr.bf16.mxu0 0
      %576 = vmatpush1.bf16.msra.mxu0 0
      %577 = vmatprep.subr.bf16.mxu0 0
      %578 = vmatpush1.bf16.msra.mxu0 0
      %579 = vmatprep.subr.bf16.mxu0 0
      %580 = vmatpush1.bf16.msra.mxu0 0
      %581 = vmatprep.subr.bf16.mxu0 0
      %582 = vmatpush1.bf16.msra.mxu0 0
      %583 = vmatprep.subr.bf16.mxu0 0
      %584 = vmatpush1.bf16.msra.mxu0 0
      %585 = vmatprep.subr.bf16.mxu0 0
      %586 = vmatpush1.bf16.msra.mxu0 0
      %587 = vmatprep.subr.bf16.mxu0 0
      %588 = vmatpush1.bf16.msra.mxu0 0
      %589 = vmatprep.subr.bf16.mxu0 0
      %590 = vmatpush1.bf16.msra.mxu0 0
      %591 = vmatprep.subr.bf16.mxu0 0
      %592 = vmatpush1.bf16.msra.mxu0 0
      %593 = vmatprep.subr.bf16.mxu0 0
      %594 = vmatpush1.bf16.msra.mxu0 0
      %595 = vmatprep.subr.bf16.mxu0 0
      %596 = vmatpush1.bf16.msra.mxu0 0
      %597 = vmatprep.subr.bf16.mxu0 0
      %598 = vmatpush1.bf16.msra.mxu0 0
      %599 = vmatprep.mubr.bf16.mxu0 0
      %600 = vmatmul.mubr.bf16.gmra.mrb[0].mxu0 %v565
      %v601 = vpop.f32.mrb[0].mxu0
      %v602 = vadd.f32 0.0, %v601
      %v603 = vpop.f32.mrb[0].mxu0
      %v604 = vadd.f32 0.0, %v603
      %v605 = vpop.f32.mrb[0].mxu0
      %v606 = vadd.f32 0.0, %v605
      %v607 = vpop.f32.mrb[0].mxu0
      %v608 = vadd.f32 0.0, %v607
      %609 = vdwg.mxu0
      %v610 = vadd.f32 %v537, %v602
      %v611 = vadd.f32 %v538, %v604
      %v612 = vadd.f32 %v539, %v606
      %v613 = vadd.f32 %v540, %v608
      %s614 = scalar_lea.vmem %s1, 48
      %v615 = vld [vmem:[%s614] sm:$0xf]
      %v616 = vld [vmem:[%s614 + $0x4] sm:$0xf]
      %v619 = vunpack.c.l.b16 %v615
      %v620 = vunpack.c.l.b16 %v616
      %v621 = vpack.c.b16 %v620, %v619
      %622 = vrot.lane.b32.xlu0 %v190, 96
      %v623 = vpop.permute.xlu0 %622
      %624 = vrot.lane.b32.xlu0 %v191, 96
      %v625 = vpop.permute.xlu0 %624
      %626 = vrot.lane.b32.xlu0 %v192, 96
      %v627 = vpop.permute.xlu0 %626
      %628 = vrot.lane.b32.xlu0 %v193, 96
      %v629 = vpop.permute.xlu0 %628
      %vm630 = vcmask 785408
      %v631 = vsel %vm630, %v623, %v625
      %v632 = vsel %vm630, %v627, %v629
      %v638 = vsel %vm198, %v621, 0
      %640 = vmatprep.subr.bf16.mxu0 %v625
      %641 = vmatpush1.bf16.msra.mxu0 %v631
      %642 = vmatprep.subr.bf16.mxu0 %v629
      %643 = vmatpush1.bf16.msra.mxu0 %v632
      %644 = vmatprep.subr.bf16.mxu0 0
      %645 = vmatpush1.bf16.msra.mxu0 0
      %646 = vmatprep.subr.bf16.mxu0 0
      %647 = vmatpush1.bf16.msra.mxu0 0
      %648 = vmatprep.subr.bf16.mxu0 0
      %649 = vmatpush1.bf16.msra.mxu0 0
      %650 = vmatprep.subr.bf16.mxu0 0
      %651 = vmatpush1.bf16.msra.mxu0 0
      %652 = vmatprep.subr.bf16.mxu0 0
      %653 = vmatpush1.bf16.msra.mxu0 0
      %654 = vmatprep.subr.bf16.mxu0 0
      %655 = vmatpush1.bf16.msra.mxu0 0
      %656 = vmatprep.subr.bf16.mxu0 0
      %657 = vmatpush1.bf16.msra.mxu0 0
      %658 = vmatprep.subr.bf16.mxu0 0
      %659 = vmatpush1.bf16.msra.mxu0 0
      %660 = vmatprep.subr.bf16.mxu0 0
      %661 = vmatpush1.bf16.msra.mxu0 0
      %662 = vmatprep.subr.bf16.mxu0 0
      %663 = vmatpush1.bf16.msra.mxu0 0
      %664 = vmatprep.subr.bf16.mxu0 0
      %665 = vmatpush1.bf16.msra.mxu0 0
      %666 = vmatprep.subr.bf16.mxu0 0
      %667 = vmatpush1.bf16.msra.mxu0 0
      %668 = vmatprep.subr.bf16.mxu0 0
      %669 = vmatpush1.bf16.msra.mxu0 0
      %670 = vmatprep.subr.bf16.mxu0 0
      %671 = vmatpush1.bf16.msra.mxu0 0
      %672 = vmatprep.mubr.bf16.mxu0 0
      %673 = vmatmul.mubr.bf16.gmra.mrb[0].mxu0 %v638
      %v674 = vpop.f32.mrb[0].mxu0
      %v675 = vadd.f32 0.0, %v674
      %v676 = vpop.f32.mrb[0].mxu0
      %v677 = vadd.f32 0.0, %v676
      %v678 = vpop.f32.mrb[0].mxu0
      %v679 = vadd.f32 0.0, %v678
      %v680 = vpop.f32.mrb[0].mxu0
      %v681 = vadd.f32 0.0, %v680
      %682 = vdwg.mxu0
      %v683 = vadd.f32 %v610, %v675
      %v684 = vadd.f32 %v611, %v677
      %v685 = vadd.f32 %v612, %v679
      %v686 = vadd.f32 %v613, %v681
      %v687 = vld [vmem:[%s166] sm:$0xff]
      %v688 = vld [vmem:[%s166 + $0x8] sm:$0xf]
      %v689 = vld [vmem:[%s166 + $0xc] sm:$0xff]
      %v690 = vld [vmem:[%s166 + $0x14] sm:$0xf]
      %v691 = vld [vmem:[%s166 + $0x18] sm:$0xff]
      %v692 = vld [vmem:[%s166 + $0x20] sm:$0xf]
      %v693 = vld [vmem:[%s166 + $0x24] sm:$0xff]
      %v694 = vld [vmem:[%s166 + $0x2c] sm:$0xf]
      %s695 = scalar_lea.vmem %s1, 56
      %v696 = vld [vmem:[%s695] sm:$0xf]
      %v697 = vld [vmem:[%s695 + $0x4] sm:$0xf]
      %v700 = vunpack.c.l.b16 %v696
      %v701 = vunpack.c.l.b16 %v697
      %v702 = vpack.c.b16 %v701, %v700
      %v711 = vunpack.c.l.b16 %v687
      %v712 = vunpack.c.h.b16 %v687
      %v713 = vunpack.c.l.b16 %v688
      %v714 = vunpack.c.l.b16 %v689
      %v715 = vunpack.c.h.b16 %v689
      %v716 = vunpack.c.l.b16 %v690
      %v717 = vunpack.c.l.b16 %v691
      %v718 = vunpack.c.h.b16 %v691
      %v719 = vunpack.c.l.b16 %v692
      %v720 = vunpack.c.l.b16 %v693
      %v721 = vunpack.c.h.b16 %v693
      %v722 = vunpack.c.l.b16 %v694
      %v723 = vpack.c.b16 %v714, %v711
      %v724 = vpack.c.b16 %v715, %v712
      %v725 = vpack.c.b16 %v716, %v713
      %v726 = vpack.c.b16 %v720, %v717
      %v727 = vpack.c.b16 %v721, %v718
      %v728 = vpack.c.b16 %v722, %v719
      %729 = vrot.lane.b32.xlu0 %v723, 95
      %v730 = vpop.permute.xlu0 %729
      %731 = vrot.lane.b32.xlu0 %v724, 95
      %v732 = vpop.permute.xlu0 %731
      %733 = vrot.lane.b32.xlu0 %v725, 95
      %v734 = vpop.permute.xlu0 %733
      %735 = vrot.lane.b32.xlu0 %v726, 95
      %v736 = vpop.permute.xlu0 %735
      %737 = vrot.lane.b32.xlu0 %v727, 95
      %v738 = vpop.permute.xlu0 %737
      %739 = vrot.lane.b32.xlu0 %v728, 95
      %v740 = vpop.permute.xlu0 %739
      %vm741 = vcmask 777216
      %v742 = vsel %vm741, %v730, %v732
      %v743 = vsel %vm741, %v732, %v734
      %v744 = vsel %vm741, %v736, %v738
      %v745 = vsel %vm741, %v738, %v740
      %v751 = vsel %vm198, %v702, 0
      %753 = vmatprep.subr.bf16.mxu0 %v743
      %754 = vmatpush1.bf16.msra.mxu0 %v742
      %755 = vmatprep.subr.bf16.mxu0 %v745
      %756 = vmatpush1.bf16.msra.mxu0 %v744
      %757 = vmatprep.subr.bf16.mxu0 0
      %758 = vmatpush1.bf16.msra.mxu0 0
      %759 = vmatprep.subr.bf16.mxu0 0
      %760 = vmatpush1.bf16.msra.mxu0 0
      %761 = vmatprep.subr.bf16.mxu0 0
      %762 = vmatpush1.bf16.msra.mxu0 0
      %763 = vmatprep.subr.bf16.mxu0 0
      %764 = vmatpush1.bf16.msra.mxu0 0
      %765 = vmatprep.subr.bf16.mxu0 0
      %766 = vmatpush1.bf16.msra.mxu0 0
      %767 = vmatprep.subr.bf16.mxu0 0
      %768 = vmatpush1.bf16.msra.mxu0 0
      %769 = vmatprep.subr.bf16.mxu0 0
      %770 = vmatpush1.bf16.msra.mxu0 0
      %771 = vmatprep.subr.bf16.mxu0 0
      %772 = vmatpush1.bf16.msra.mxu0 0
      %773 = vmatprep.subr.bf16.mxu0 0
      %774 = vmatpush1.bf16.msra.mxu0 0
      %775 = vmatprep.subr.bf16.mxu0 0
      %776 = vmatpush1.bf16.msra.mxu0 0
      %777 = vmatprep.subr.bf16.mxu0 0
      %778 = vmatpush1.bf16.msra.mxu0 0
      %779 = vmatprep.subr.bf16.mxu0 0
      %780 = vmatpush1.bf16.msra.mxu0 0
      %781 = vmatprep.subr.bf16.mxu0 0
      %782 = vmatpush1.bf16.msra.mxu0 0
      %783 = vmatprep.subr.bf16.mxu0 0
      %784 = vmatpush1.bf16.msra.mxu0 0
      %785 = vmatprep.mubr.bf16.mxu0 0
      %786 = vmatmul.mubr.bf16.gmra.mrb[0].mxu0 %v751
      %v787 = vpop.f32.mrb[0].mxu0
      %v788 = vadd.f32 0.0, %v787
      %v789 = vpop.f32.mrb[0].mxu0
      %v790 = vadd.f32 0.0, %v789
      %v791 = vpop.f32.mrb[0].mxu0
      %v792 = vadd.f32 0.0, %v791
      %v793 = vpop.f32.mrb[0].mxu0
      %v794 = vadd.f32 0.0, %v793
      %795 = vdwg.mxu0
      %v796 = vadd.f32 %v683, %v788
      %v797 = vadd.f32 %v684, %v790
      %v798 = vadd.f32 %v685, %v792
      %v799 = vadd.f32 %v686, %v794
      %s800 = scalar_lea.vmem %s1, 64
      %v801 = vld [vmem:[%s800] sm:$0xf]
      %v802 = vld [vmem:[%s800 + $0x4] sm:$0xf]
      %v805 = vunpack.c.l.b16 %v801
      %v806 = vunpack.c.l.b16 %v802
      %v807 = vpack.c.b16 %v806, %v805
      %808 = vrot.lane.b32.xlu0 %v723, 94
      %v809 = vpop.permute.xlu0 %808
      %810 = vrot.lane.b32.xlu0 %v724, 94
      %v811 = vpop.permute.xlu0 %810
      %812 = vrot.lane.b32.xlu0 %v725, 94
      %v813 = vpop.permute.xlu0 %812
      %814 = vrot.lane.b32.xlu0 %v726, 94
      %v815 = vpop.permute.xlu0 %814
      %816 = vrot.lane.b32.xlu0 %v727, 94
      %v817 = vpop.permute.xlu0 %816
      %818 = vrot.lane.b32.xlu0 %v728, 94
      %v819 = vpop.permute.xlu0 %818
      %vm820 = vcmask 769024
      %v821 = vsel %vm820, %v809, %v811
      %v822 = vsel %vm820, %v811, %v813
      %v823 = vsel %vm820, %v815, %v817
      %v824 = vsel %vm820, %v817, %v819
      %v830 = vsel %vm198, %v807, 0
      %832 = vmatprep.subr.bf16.mxu0 %v822
      %833 = vmatpush1.bf16.msra.mxu0 %v821
      %834 = vmatprep.subr.bf16.mxu0 %v824
      %835 = vmatpush1.bf16.msra.mxu0 %v823
      %836 = vmatprep.subr.bf16.mxu0 0
      %837 = vmatpush1.bf16.msra.mxu0 0
      %838 = vmatprep.subr.bf16.mxu0 0
      %839 = vmatpush1.bf16.msra.mxu0 0
      %840 = vmatprep.subr.bf16.mxu0 0
      %841 = vmatpush1.bf16.msra.mxu0 0
      %842 = vmatprep.subr.bf16.mxu0 0
      %843 = vmatpush1.bf16.msra.mxu0 0
      %844 = vmatprep.subr.bf16.mxu0 0
      %845 = vmatpush1.bf16.msra.mxu0 0
      %846 = vmatprep.subr.bf16.mxu0 0
      %847 = vmatpush1.bf16.msra.mxu0 0
      %848 = vmatprep.subr.bf16.mxu0 0
      %849 = vmatpush1.bf16.msra.mxu0 0
      %850 = vmatprep.subr.bf16.mxu0 0
      %851 = vmatpush1.bf16.msra.mxu0 0
      %852 = vmatprep.subr.bf16.mxu0 0
      %853 = vmatpush1.bf16.msra.mxu0 0
      %854 = vmatprep.subr.bf16.mxu0 0
      %855 = vmatpush1.bf16.msra.mxu0 0
      %856 = vmatprep.subr.bf16.mxu0 0
      %857 = vmatpush1.bf16.msra.mxu0 0
      %858 = vmatprep.subr.bf16.mxu0 0
      %859 = vmatpush1.bf16.msra.mxu0 0
      %860 = vmatprep.subr.bf16.mxu0 0
      %861 = vmatpush1.bf16.msra.mxu0 0
      %862 = vmatprep.subr.bf16.mxu0 0
      %863 = vmatpush1.bf16.msra.mxu0 0
      %864 = vmatprep.mubr.bf16.mxu0 0
      %865 = vmatmul.mubr.bf16.gmra.mrb[0].mxu0 %v830
      %v866 = vpop.f32.mrb[0].mxu0
      %v867 = vadd.f32 0.0, %v866
      %v868 = vpop.f32.mrb[0].mxu0
      %v869 = vadd.f32 0.0, %v868
      %v870 = vpop.f32.mrb[0].mxu0
      %v871 = vadd.f32 0.0, %v870
      %v872 = vpop.f32.mrb[0].mxu0
      %v873 = vadd.f32 0.0, %v872
      %874 = vdwg.mxu0
      %v875 = vadd.f32 %v796, %v867
      %v876 = vadd.f32 %v797, %v869
      %v877 = vadd.f32 %v798, %v871
      %v878 = vadd.f32 %v799, %v873
      %s879 = sadd.s32 %s14, 1
      %s880 = smul.u32 %s879, 12
      %s881 = smul.addr %s880, 4
      %s882 = scalar_lea.vmem %s0, %s881
      %v883 = vld [vmem:[%s882] sm:$0xff]
      %v884 = vld [vmem:[%s882 + $0xc] sm:$0xff]
      %v885 = vld [vmem:[%s882 + $0x18] sm:$0xff]
      %v886 = vld [vmem:[%s882 + $0x24] sm:$0xff]
      %s887 = scalar_lea.vmem %s1, 72
      %v888 = vld [vmem:[%s887] sm:$0xf]
      %v889 = vld [vmem:[%s887 + $0x4] sm:$0xf]
      %v892 = vunpack.c.l.b16 %v888
      %v893 = vunpack.c.l.b16 %v889
      %v894 = vpack.c.b16 %v893, %v892
      %v899 = vunpack.c.l.b16 %v883
      %v900 = vunpack.c.h.b16 %v883
      %v901 = vunpack.c.l.b16 %v884
      %v902 = vunpack.c.h.b16 %v884
      %v903 = vunpack.c.l.b16 %v885
      %v904 = vunpack.c.h.b16 %v885
      %v905 = vunpack.c.l.b16 %v886
      %v906 = vunpack.c.h.b16 %v886
      %v907 = vpack.c.b16 %v901, %v899
      %v908 = vpack.c.b16 %v902, %v900
      %v909 = vpack.c.b16 %v905, %v903
      %v910 = vpack.c.b16 %v906, %v904
      %v916 = vsel %vm198, %v894, 0
      %918 = vmatprep.subr.bf16.mxu0 %v908
      %919 = vmatpush1.bf16.msra.mxu0 %v907
      %920 = vmatprep.subr.bf16.mxu0 %v910
      %921 = vmatpush1.bf16.msra.mxu0 %v909
      %922 = vmatprep.subr.bf16.mxu0 0
      %923 = vmatpush1.bf16.msra.mxu0 0
      %924 = vmatprep.subr.bf16.mxu0 0
      %925 = vmatpush1.bf16.msra.mxu0 0
      %926 = vmatprep.subr.bf16.mxu0 0
      %927 = vmatpush1.bf16.msra.mxu0 0
      %928 = vmatprep.subr.bf16.mxu0 0
      %929 = vmatpush1.bf16.msra.mxu0 0
      %930 = vmatprep.subr.bf16.mxu0 0
      %931 = vmatpush1.bf16.msra.mxu0 0
      %932 = vmatprep.subr.bf16.mxu0 0
      %933 = vmatpush1.bf16.msra.mxu0 0
      %934 = vmatprep.subr.bf16.mxu0 0
      %935 = vmatpush1.bf16.msra.mxu0 0
      %936 = vmatprep.subr.bf16.mxu0 0
      %937 = vmatpush1.bf16.msra.mxu0 0
      %938 = vmatprep.subr.bf16.mxu0 0
      %939 = vmatpush1.bf16.msra.mxu0 0
      %940 = vmatprep.subr.bf16.mxu0 0
      %941 = vmatpush1.bf16.msra.mxu0 0
      %942 = vmatprep.subr.bf16.mxu0 0
      %943 = vmatpush1.bf16.msra.mxu0 0
      %944 = vmatprep.subr.bf16.mxu0 0
      %945 = vmatpush1.bf16.msra.mxu0 0
      %946 = vmatprep.subr.bf16.mxu0 0
      %947 = vmatpush1.bf16.msra.mxu0 0
      %948 = vmatprep.subr.bf16.mxu0 0
      %949 = vmatpush1.bf16.msra.mxu0 0
      %950 = vmatprep.mubr.bf16.mxu0 0
      %951 = vmatmul.mubr.bf16.gmra.mrb[0].mxu0 %v916
      %v952 = vpop.f32.mrb[0].mxu0
      %v953 = vadd.f32 0.0, %v952
      %v954 = vpop.f32.mrb[0].mxu0
      %v955 = vadd.f32 0.0, %v954
      %v956 = vpop.f32.mrb[0].mxu0
      %v957 = vadd.f32 0.0, %v956
      %v958 = vpop.f32.mrb[0].mxu0
      %v959 = vadd.f32 0.0, %v958
      %960 = vdwg.mxu0
      %v961 = vadd.f32 %v875, %v953
      %v962 = vadd.f32 %v876, %v955
      %v963 = vadd.f32 %v877, %v957
      %v964 = vadd.f32 %v878, %v959
      %s965 = scalar_lea.vmem %s1, 80
      %v966 = vld [vmem:[%s965] sm:$0xf]
      %v967 = vld [vmem:[%s965 + $0x4] sm:$0xf]
      %v970 = vunpack.c.l.b16 %v966
      %v971 = vunpack.c.l.b16 %v967
      %v972 = vpack.c.b16 %v971, %v970
      %973 = vrot.lane.b32.xlu0 %v907, 127
      %v974 = vpop.permute.xlu0 %973
      %975 = vrot.lane.b32.xlu0 %v908, 127
      %v976 = vpop.permute.xlu0 %975
      %977 = vrot.lane.b32.xlu0 %v909, 127
      %v978 = vpop.permute.xlu0 %977
      %979 = vrot.lane.b32.xlu0 %v910, 127
      %v980 = vpop.permute.xlu0 %979
      %v981 = vsel %vm265, %v974, %v976
      %v982 = vsel %vm265, %v978, %v980
      %v988 = vsel %vm198, %v972, 0
      %990 = vmatprep.subr.bf16.mxu0 %v976
      %991 = vmatpush1.bf16.msra.mxu0 %v981
      %992 = vmatprep.subr.bf16.mxu0 %v980
      %993 = vmatpush1.bf16.msra.mxu0 %v982
      %994 = vmatprep.subr.bf16.mxu0 0
      %995 = vmatpush1.bf16.msra.mxu0 0
      %996 = vmatprep.subr.bf16.mxu0 0
      %997 = vmatpush1.bf16.msra.mxu0 0
      %998 = vmatprep.subr.bf16.mxu0 0
      %999 = vmatpush1.bf16.msra.mxu0 0
      %1000 = vmatprep.subr.bf16.mxu0 0
      %1001 = vmatpush1.bf16.msra.mxu0 0
      %1002 = vmatprep.subr.bf16.mxu0 0
      %1003 = vmatpush1.bf16.msra.mxu0 0
      %1004 = vmatprep.subr.bf16.mxu0 0
      %1005 = vmatpush1.bf16.msra.mxu0 0
      %1006 = vmatprep.subr.bf16.mxu0 0
      %1007 = vmatpush1.bf16.msra.mxu0 0
      %1008 = vmatprep.subr.bf16.mxu0 0
      %1009 = vmatpush1.bf16.msra.mxu0 0
      %1010 = vmatprep.subr.bf16.mxu0 0
      %1011 = vmatpush1.bf16.msra.mxu0 0
      %1012 = vmatprep.subr.bf16.mxu0 0
      %1013 = vmatpush1.bf16.msra.mxu0 0
      %1014 = vmatprep.subr.bf16.mxu0 0
      %1015 = vmatpush1.bf16.msra.mxu0 0
      %1016 = vmatprep.subr.bf16.mxu0 0
      %1017 = vmatpush1.bf16.msra.mxu0 0
      %1018 = vmatprep.subr.bf16.mxu0 0
      %1019 = vmatpush1.bf16.msra.mxu0 0
      %1020 = vmatprep.subr.bf16.mxu0 0
      %1021 = vmatpush1.bf16.msra.mxu0 0
      %1022 = vmatprep.mubr.bf16.mxu0 0
      %1023 = vmatmul.mubr.bf16.gmra.mrb[0].mxu0 %v988
      %v1024 = vpop.f32.mrb[0].mxu0
      %v1025 = vadd.f32 0.0, %v1024
      %v1026 = vpop.f32.mrb[0].mxu0
      %v1027 = vadd.f32 0.0, %v1026
      %v1028 = vpop.f32.mrb[0].mxu0
      %v1029 = vadd.f32 0.0, %v1028
      %v1030 = vpop.f32.mrb[0].mxu0
      %v1031 = vadd.f32 0.0, %v1030
      %1032 = vdwg.mxu0
      %v1033 = vadd.f32 %v961, %v1025
      %v1034 = vadd.f32 %v962, %v1027
      %v1035 = vadd.f32 %v963, %v1029
      %v1036 = vadd.f32 %v964, %v1031
      %s1037 = scalar_lea.vmem %s1, 88
      %v1038 = vld [vmem:[%s1037] sm:$0xf]
      %v1039 = vld [vmem:[%s1037 + $0x4] sm:$0xf]
      %v1042 = vunpack.c.l.b16 %v1038
      %v1043 = vunpack.c.l.b16 %v1039
      %v1044 = vpack.c.b16 %v1043, %v1042
      %1045 = vrot.lane.b32.xlu0 %v907, 126
      %v1046 = vpop.permute.xlu0 %1045
      %1047 = vrot.lane.b32.xlu0 %v908, 126
      %v1048 = vpop.permute.xlu0 %1047
      %1049 = vrot.lane.b32.xlu0 %v909, 126
      %v1050 = vpop.permute.xlu0 %1049
      %1051 = vrot.lane.b32.xlu0 %v910, 126
      %v1052 = vpop.permute.xlu0 %1051
      %v1053 = vsel %vm338, %v1046, %v1048
      %v1054 = vsel %vm338, %v1050, %v1052
      %v1060 = vsel %vm198, %v1044, 0
      %1062 = vmatprep.subr.bf16.mxu0 %v1048
      %1063 = vmatpush1.bf16.msra.mxu0 %v1053
      %1064 = vmatprep.subr.bf16.mxu0 %v1052
      %1065 = vmatpush1.bf16.msra.mxu0 %v1054
      %1066 = vmatprep.subr.bf16.mxu0 0
      %1067 = vmatpush1.bf16.msra.mxu0 0
      %1068 = vmatprep.subr.bf16.mxu0 0
      %1069 = vmatpush1.bf16.msra.mxu0 0
      %1070 = vmatprep.subr.bf16.mxu0 0
      %1071 = vmatpush1.bf16.msra.mxu0 0
      %1072 = vmatprep.subr.bf16.mxu0 0
      %1073 = vmatpush1.bf16.msra.mxu0 0
      %1074 = vmatprep.subr.bf16.mxu0 0
      %1075 = vmatpush1.bf16.msra.mxu0 0
      %1076 = vmatprep.subr.bf16.mxu0 0
      %1077 = vmatpush1.bf16.msra.mxu0 0
      %1078 = vmatprep.subr.bf16.mxu0 0
      %1079 = vmatpush1.bf16.msra.mxu0 0
      %1080 = vmatprep.subr.bf16.mxu0 0
      %1081 = vmatpush1.bf16.msra.mxu0 0
      %1082 = vmatprep.subr.bf16.mxu0 0
      %1083 = vmatpush1.bf16.msra.mxu0 0
      %1084 = vmatprep.subr.bf16.mxu0 0
      %1085 = vmatpush1.bf16.msra.mxu0 0
      %1086 = vmatprep.subr.bf16.mxu0 0
      %1087 = vmatpush1.bf16.msra.mxu0 0
      %1088 = vmatprep.subr.bf16.mxu0 0
      %1089 = vmatpush1.bf16.msra.mxu0 0
      %1090 = vmatprep.subr.bf16.mxu0 0
      %1091 = vmatpush1.bf16.msra.mxu0 0
      %1092 = vmatprep.subr.bf16.mxu0 0
      %1093 = vmatpush1.bf16.msra.mxu0 0
      %1094 = vmatprep.mubr.bf16.mxu0 0
      %1095 = vmatmul.mubr.bf16.gmra.mrb[0].mxu0 %v1060
      %v1096 = vpop.f32.mrb[0].mxu0
      %v1097 = vadd.f32 0.0, %v1096
      %v1098 = vpop.f32.mrb[0].mxu0
      %v1099 = vadd.f32 0.0, %v1098
      %v1100 = vpop.f32.mrb[0].mxu0
      %v1101 = vadd.f32 0.0, %v1100
      %v1102 = vpop.f32.mrb[0].mxu0
      %v1103 = vadd.f32 0.0, %v1102
      %1104 = vdwg.mxu0
      %v1105 = vadd.f32 %v1033, %v1097
      %v1106 = vadd.f32 %v1034, %v1099
      %v1107 = vadd.f32 %v1035, %v1101
      %v1108 = vadd.f32 %v1036, %v1103
      %s1109 = scalar_lea.vmem %s1, 96
      %v1110 = vld [vmem:[%s1109] sm:$0xf]
      %v1111 = vld [vmem:[%s1109 + $0x4] sm:$0xf]
      %v1114 = vunpack.c.l.b16 %v1110
      %v1115 = vunpack.c.l.b16 %v1111
      %v1116 = vpack.c.b16 %v1115, %v1114
      %1117 = vrot.lane.b32.xlu0 %v907, 112
      %v1118 = vpop.permute.xlu0 %1117
      %1119 = vrot.lane.b32.xlu0 %v908, 112
      %v1120 = vpop.permute.xlu0 %1119
      %1121 = vrot.lane.b32.xlu0 %v909, 112
      %v1122 = vpop.permute.xlu0 %1121
      %1123 = vrot.lane.b32.xlu0 %v910, 112
      %v1124 = vpop.permute.xlu0 %1123
      %v1125 = vsel %vm411, %v1118, %v1120
      %v1126 = vsel %vm411, %v1122, %v1124
      %v1132 = vsel %vm198, %v1116, 0
      %1134 = vmatprep.subr.bf16.mxu0 %v1120
      %1135 = vmatpush1.bf16.msra.mxu0 %v1125
      %1136 = vmatprep.subr.bf16.mxu0 %v1124
      %1137 = vmatpush1.bf16.msra.mxu0 %v1126
      %1138 = vmatprep.subr.bf16.mxu0 0
      %1139 = vmatpush1.bf16.msra.mxu0 0
      %1140 = vmatprep.subr.bf16.mxu0 0
      %1141 = vmatpush1.bf16.msra.mxu0 0
      %1142 = vmatprep.subr.bf16.mxu0 0
      %1143 = vmatpush1.bf16.msra.mxu0 0
      %1144 = vmatprep.subr.bf16.mxu0 0
      %1145 = vmatpush1.bf16.msra.mxu0 0
      %1146 = vmatprep.subr.bf16.mxu0 0
      %1147 = vmatpush1.bf16.msra.mxu0 0
      %1148 = vmatprep.subr.bf16.mxu0 0
      %1149 = vmatpush1.bf16.msra.mxu0 0
      %1150 = vmatprep.subr.bf16.mxu0 0
      %1151 = vmatpush1.bf16.msra.mxu0 0
      %1152 = vmatprep.subr.bf16.mxu0 0
      %1153 = vmatpush1.bf16.msra.mxu0 0
      %1154 = vmatprep.subr.bf16.mxu0 0
      %1155 = vmatpush1.bf16.msra.mxu0 0
      %1156 = vmatprep.subr.bf16.mxu0 0
      %1157 = vmatpush1.bf16.msra.mxu0 0
      %1158 = vmatprep.subr.bf16.mxu0 0
      %1159 = vmatpush1.bf16.msra.mxu0 0
      %1160 = vmatprep.subr.bf16.mxu0 0
      %1161 = vmatpush1.bf16.msra.mxu0 0
      %1162 = vmatprep.subr.bf16.mxu0 0
      %1163 = vmatpush1.bf16.msra.mxu0 0
      %1164 = vmatprep.subr.bf16.mxu0 0
      %1165 = vmatpush1.bf16.msra.mxu0 0
      %1166 = vmatprep.mubr.bf16.mxu0 0
      %1167 = vmatmul.mubr.bf16.gmra.mrb[0].mxu0 %v1132
      %v1168 = vpop.f32.mrb[0].mxu0
      %v1169 = vadd.f32 0.0, %v1168
      %v1170 = vpop.f32.mrb[0].mxu0
      %v1171 = vadd.f32 0.0, %v1170
      %v1172 = vpop.f32.mrb[0].mxu0
      %v1173 = vadd.f32 0.0, %v1172
      %v1174 = vpop.f32.mrb[0].mxu0
      %v1175 = vadd.f32 0.0, %v1174
      %1176 = vdwg.mxu0
      %v1177 = vadd.f32 %v1105, %v1169
      %v1178 = vadd.f32 %v1106, %v1171
      %v1179 = vadd.f32 %v1107, %v1173
      %v1180 = vadd.f32 %v1108, %v1175
      %s1181 = scalar_lea.vmem %s1, 104
      %v1182 = vld [vmem:[%s1181] sm:$0xf]
      %v1183 = vld [vmem:[%s1181 + $0x4] sm:$0xf]
      %v1186 = vunpack.c.l.b16 %v1182
      %v1187 = vunpack.c.l.b16 %v1183
      %v1188 = vpack.c.b16 %v1187, %v1186
      %1189 = vrot.lane.b32.xlu0 %v907, 111
      %v1190 = vpop.permute.xlu0 %1189
      %1191 = vrot.lane.b32.xlu0 %v908, 111
      %v1192 = vpop.permute.xlu0 %1191
      %1193 = vrot.lane.b32.xlu0 %v909, 111
      %v1194 = vpop.permute.xlu0 %1193
      %1195 = vrot.lane.b32.xlu0 %v910, 111
      %v1196 = vpop.permute.xlu0 %1195
      %v1197 = vsel %vm484, %v1190, %v1192
      %v1198 = vsel %vm484, %v1194, %v1196
      %v1204 = vsel %vm198, %v1188, 0
      %1206 = vmatprep.subr.bf16.mxu0 %v1192
      %1207 = vmatpush1.bf16.msra.mxu0 %v1197
      %1208 = vmatprep.subr.bf16.mxu0 %v1196
      %1209 = vmatpush1.bf16.msra.mxu0 %v1198
      %1210 = vmatprep.subr.bf16.mxu0 0
      %1211 = vmatpush1.bf16.msra.mxu0 0
      %1212 = vmatprep.subr.bf16.mxu0 0
      %1213 = vmatpush1.bf16.msra.mxu0 0
      %1214 = vmatprep.subr.bf16.mxu0 0
      %1215 = vmatpush1.bf16.msra.mxu0 0
      %1216 = vmatprep.subr.bf16.mxu0 0
      %1217 = vmatpush1.bf16.msra.mxu0 0
      %1218 = vmatprep.subr.bf16.mxu0 0
      %1219 = vmatpush1.bf16.msra.mxu0 0
      %1220 = vmatprep.subr.bf16.mxu0 0
      %1221 = vmatpush1.bf16.msra.mxu0 0
      %1222 = vmatprep.subr.bf16.mxu0 0
      %1223 = vmatpush1.bf16.msra.mxu0 0
      %1224 = vmatprep.subr.bf16.mxu0 0
      %1225 = vmatpush1.bf16.msra.mxu0 0
      %1226 = vmatprep.subr.bf16.mxu0 0
      %1227 = vmatpush1.bf16.msra.mxu0 0
      %1228 = vmatprep.subr.bf16.mxu0 0
      %1229 = vmatpush1.bf16.msra.mxu0 0
      %1230 = vmatprep.subr.bf16.mxu0 0
      %1231 = vmatpush1.bf16.msra.mxu0 0
      %1232 = vmatprep.subr.bf16.mxu0 0
      %1233 = vmatpush1.bf16.msra.mxu0 0
      %1234 = vmatprep.subr.bf16.mxu0 0
      %1235 = vmatpush1.bf16.msra.mxu0 0
      %1236 = vmatprep.subr.bf16.mxu0 0
      %1237 = vmatpush1.bf16.msra.mxu0 0
      %1238 = vmatprep.mubr.bf16.mxu0 0
      %1239 = vmatmul.mubr.bf16.gmra.mrb[0].mxu0 %v1204
      %v1240 = vpop.f32.mrb[0].mxu0
      %v1241 = vadd.f32 0.0, %v1240
      %v1242 = vpop.f32.mrb[0].mxu0
      %v1243 = vadd.f32 0.0, %v1242
      %v1244 = vpop.f32.mrb[0].mxu0
      %v1245 = vadd.f32 0.0, %v1244
      %v1246 = vpop.f32.mrb[0].mxu0
      %v1247 = vadd.f32 0.0, %v1246
      %1248 = vdwg.mxu0
      %v1249 = vadd.f32 %v1177, %v1241
      %v1250 = vadd.f32 %v1178, %v1243
      %v1251 = vadd.f32 %v1179, %v1245
      %v1252 = vadd.f32 %v1180, %v1247
      %s1253 = scalar_lea.vmem %s1, 112
      %v1254 = vld [vmem:[%s1253] sm:$0xf]
      %v1255 = vld [vmem:[%s1253 + $0x4] sm:$0xf]
      %v1258 = vunpack.c.l.b16 %v1254
      %v1259 = vunpack.c.l.b16 %v1255
      %v1260 = vpack.c.b16 %v1259, %v1258
      %1261 = vrot.lane.b32.xlu0 %v907, 110
      %v1262 = vpop.permute.xlu0 %1261
      %1263 = vrot.lane.b32.xlu0 %v908, 110
      %v1264 = vpop.permute.xlu0 %1263
      %1265 = vrot.lane.b32.xlu0 %v909, 110
      %v1266 = vpop.permute.xlu0 %1265
      %1267 = vrot.lane.b32.xlu0 %v910, 110
      %v1268 = vpop.permute.xlu0 %1267
      %v1269 = vsel %vm557, %v1262, %v1264
      %v1270 = vsel %vm557, %v1266, %v1268
      %v1276 = vsel %vm198, %v1260, 0
      %1278 = vmatprep.subr.bf16.mxu0 %v1264
      %1279 = vmatpush1.bf16.msra.mxu0 %v1269
      %1280 = vmatprep.subr.bf16.mxu0 %v1268
      %1281 = vmatpush1.bf16.msra.mxu0 %v1270
      %1282 = vmatprep.subr.bf16.mxu0 0
      %1283 = vmatpush1.bf16.msra.mxu0 0
      %1284 = vmatprep.subr.bf16.mxu0 0
      %1285 = vmatpush1.bf16.msra.mxu0 0
      %1286 = vmatprep.subr.bf16.mxu0 0
      %1287 = vmatpush1.bf16.msra.mxu0 0
      %1288 = vmatprep.subr.bf16.mxu0 0
      %1289 = vmatpush1.bf16.msra.mxu0 0
      %1290 = vmatprep.subr.bf16.mxu0 0
      %1291 = vmatpush1.bf16.msra.mxu0 0
      %1292 = vmatprep.subr.bf16.mxu0 0
      %1293 = vmatpush1.bf16.msra.mxu0 0
      %1294 = vmatprep.subr.bf16.mxu0 0
      %1295 = vmatpush1.bf16.msra.mxu0 0
      %1296 = vmatprep.subr.bf16.mxu0 0
      %1297 = vmatpush1.bf16.msra.mxu0 0
      %1298 = vmatprep.subr.bf16.mxu0 0
      %1299 = vmatpush1.bf16.msra.mxu0 0
      %1300 = vmatprep.subr.bf16.mxu0 0
      %1301 = vmatpush1.bf16.msra.mxu0 0
      %1302 = vmatprep.subr.bf16.mxu0 0
      %1303 = vmatpush1.bf16.msra.mxu0 0
      %1304 = vmatprep.subr.bf16.mxu0 0
      %1305 = vmatpush1.bf16.msra.mxu0 0
      %1306 = vmatprep.subr.bf16.mxu0 0
      %1307 = vmatpush1.bf16.msra.mxu0 0
      %1308 = vmatprep.subr.bf16.mxu0 0
      %1309 = vmatpush1.bf16.msra.mxu0 0
      %1310 = vmatprep.mubr.bf16.mxu0 0
      %1311 = vmatmul.mubr.bf16.gmra.mrb[0].mxu0 %v1276
      %v1312 = vpop.f32.mrb[0].mxu0
      %v1313 = vadd.f32 0.0, %v1312
      %v1314 = vpop.f32.mrb[0].mxu0
      %v1315 = vadd.f32 0.0, %v1314
      %v1316 = vpop.f32.mrb[0].mxu0
      %v1317 = vadd.f32 0.0, %v1316
      %v1318 = vpop.f32.mrb[0].mxu0
      %v1319 = vadd.f32 0.0, %v1318
      %1320 = vdwg.mxu0
      %v1321 = vadd.f32 %v1249, %v1313
      %v1322 = vadd.f32 %v1250, %v1315
      %v1323 = vadd.f32 %v1251, %v1317
      %v1324 = vadd.f32 %v1252, %v1319
      %s1325 = scalar_lea.vmem %s1, 120
      %v1326 = vld [vmem:[%s1325] sm:$0xf]
      %v1327 = vld [vmem:[%s1325 + $0x4] sm:$0xf]
      %v1330 = vunpack.c.l.b16 %v1326
      %v1331 = vunpack.c.l.b16 %v1327
      %v1332 = vpack.c.b16 %v1331, %v1330
      %1333 = vrot.lane.b32.xlu0 %v907, 96
      %v1334 = vpop.permute.xlu0 %1333
      %1335 = vrot.lane.b32.xlu0 %v908, 96
      %v1336 = vpop.permute.xlu0 %1335
      %1337 = vrot.lane.b32.xlu0 %v909, 96
      %v1338 = vpop.permute.xlu0 %1337
      %1339 = vrot.lane.b32.xlu0 %v910, 96
      %v1340 = vpop.permute.xlu0 %1339
      %v1341 = vsel %vm630, %v1334, %v1336
      %v1342 = vsel %vm630, %v1338, %v1340
      %v1348 = vsel %vm198, %v1332, 0
      %1350 = vmatprep.subr.bf16.mxu0 %v1336
      %1351 = vmatpush1.bf16.msra.mxu0 %v1341
      %1352 = vmatprep.subr.bf16.mxu0 %v1340
      %1353 = vmatpush1.bf16.msra.mxu0 %v1342
      %1354 = vmatprep.subr.bf16.mxu0 0
      %1355 = vmatpush1.bf16.msra.mxu0 0
      %1356 = vmatprep.subr.bf16.mxu0 0
      %1357 = vmatpush1.bf16.msra.mxu0 0
      %1358 = vmatprep.subr.bf16.mxu0 0
      %1359 = vmatpush1.bf16.msra.mxu0 0
      %1360 = vmatprep.subr.bf16.mxu0 0
      %1361 = vmatpush1.bf16.msra.mxu0 0
      %1362 = vmatprep.subr.bf16.mxu0 0
      %1363 = vmatpush1.bf16.msra.mxu0 0
      %1364 = vmatprep.subr.bf16.mxu0 0
      %1365 = vmatpush1.bf16.msra.mxu0 0
      %1366 = vmatprep.subr.bf16.mxu0 0
      %1367 = vmatpush1.bf16.msra.mxu0 0
      %1368 = vmatprep.subr.bf16.mxu0 0
      %1369 = vmatpush1.bf16.msra.mxu0 0
      %1370 = vmatprep.subr.bf16.mxu0 0
      %1371 = vmatpush1.bf16.msra.mxu0 0
      %1372 = vmatprep.subr.bf16.mxu0 0
      %1373 = vmatpush1.bf16.msra.mxu0 0
      %1374 = vmatprep.subr.bf16.mxu0 0
      %1375 = vmatpush1.bf16.msra.mxu0 0
      %1376 = vmatprep.subr.bf16.mxu0 0
      %1377 = vmatpush1.bf16.msra.mxu0 0
      %1378 = vmatprep.subr.bf16.mxu0 0
      %1379 = vmatpush1.bf16.msra.mxu0 0
      %1380 = vmatprep.subr.bf16.mxu0 0
      %1381 = vmatpush1.bf16.msra.mxu0 0
      %1382 = vmatprep.mubr.bf16.mxu0 0
      %1383 = vmatmul.mubr.bf16.gmra.mrb[0].mxu0 %v1348
      %v1384 = vpop.f32.mrb[0].mxu0
      %v1385 = vadd.f32 0.0, %v1384
      %v1386 = vpop.f32.mrb[0].mxu0
      %v1387 = vadd.f32 0.0, %v1386
      %v1388 = vpop.f32.mrb[0].mxu0
      %v1389 = vadd.f32 0.0, %v1388
      %v1390 = vpop.f32.mrb[0].mxu0
      %v1391 = vadd.f32 0.0, %v1390
      %1392 = vdwg.mxu0
      %v1393 = vadd.f32 %v1321, %v1385
      %v1394 = vadd.f32 %v1322, %v1387
      %v1395 = vadd.f32 %v1323, %v1389
      %v1396 = vadd.f32 %v1324, %v1391
      %v1397 = vld [vmem:[%s882] sm:$0xff]
      %v1398 = vld [vmem:[%s882 + $0x8] sm:$0xf]
      %v1399 = vld [vmem:[%s882 + $0xc] sm:$0xff]
      %v1400 = vld [vmem:[%s882 + $0x14] sm:$0xf]
      %v1401 = vld [vmem:[%s882 + $0x18] sm:$0xff]
      %v1402 = vld [vmem:[%s882 + $0x20] sm:$0xf]
      %v1403 = vld [vmem:[%s882 + $0x24] sm:$0xff]
      %v1404 = vld [vmem:[%s882 + $0x2c] sm:$0xf]
      %s1405 = scalar_lea.vmem %s1, 128
      %v1406 = vld [vmem:[%s1405] sm:$0xf]
      %v1407 = vld [vmem:[%s1405 + $0x4] sm:$0xf]
      %v1410 = vunpack.c.l.b16 %v1406
      %v1411 = vunpack.c.l.b16 %v1407
      %v1412 = vpack.c.b16 %v1411, %v1410
      %v1421 = vunpack.c.l.b16 %v1397
      %v1422 = vunpack.c.h.b16 %v1397
      %v1423 = vunpack.c.l.b16 %v1398
      %v1424 = vunpack.c.l.b16 %v1399
      %v1425 = vunpack.c.h.b16 %v1399
      %v1426 = vunpack.c.l.b16 %v1400
      %v1427 = vunpack.c.l.b16 %v1401
      %v1428 = vunpack.c.h.b16 %v1401
      %v1429 = vunpack.c.l.b16 %v1402
      %v1430 = vunpack.c.l.b16 %v1403
      %v1431 = vunpack.c.h.b16 %v1403
      %v1432 = vunpack.c.l.b16 %v1404
      %v1433 = vpack.c.b16 %v1424, %v1421
      %v1434 = vpack.c.b16 %v1425, %v1422
      %v1435 = vpack.c.b16 %v1426, %v1423
      %v1436 = vpack.c.b16 %v1430, %v1427
      %v1437 = vpack.c.b16 %v1431, %v1428
      %v1438 = vpack.c.b16 %v1432, %v1429
      %1439 = vrot.lane.b32.xlu0 %v1433, 95
      %v1440 = vpop.permute.xlu0 %1439
      %1441 = vrot.lane.b32.xlu0 %v1434, 95
      %v1442 = vpop.permute.xlu0 %1441
      %1443 = vrot.lane.b32.xlu0 %v1435, 95
      %v1444 = vpop.permute.xlu0 %1443
      %1445 = vrot.lane.b32.xlu0 %v1436, 95
      %v1446 = vpop.permute.xlu0 %1445
      %1447 = vrot.lane.b32.xlu0 %v1437, 95
      %v1448 = vpop.permute.xlu0 %1447
      %1449 = vrot.lane.b32.xlu0 %v1438, 95
      %v1450 = vpop.permute.xlu0 %1449
      %v1451 = vsel %vm741, %v1440, %v1442
      %v1452 = vsel %vm741, %v1442, %v1444
      %v1453 = vsel %vm741, %v1446, %v1448
      %v1454 = vsel %vm741, %v1448, %v1450
      %v1460 = vsel %vm198, %v1412, 0
      %1462 = vmatprep.subr.bf16.mxu0 %v1452
      %1463 = vmatpush1.bf16.msra.mxu0 %v1451
      %1464 = vmatprep.subr.bf16.mxu0 %v1454
      %1465 = vmatpush1.bf16.msra.mxu0 %v1453
      %1466 = vmatprep.subr.bf16.mxu0 0
      %1467 = vmatpush1.bf16.msra.mxu0 0
      %1468 = vmatprep.subr.bf16.mxu0 0
      %1469 = vmatpush1.bf16.msra.mxu0 0
      %1470 = vmatprep.subr.bf16.mxu0 0
      %1471 = vmatpush1.bf16.msra.mxu0 0
      %1472 = vmatprep.subr.bf16.mxu0 0
      %1473 = vmatpush1.bf16.msra.mxu0 0
      %1474 = vmatprep.subr.bf16.mxu0 0
      %1475 = vmatpush1.bf16.msra.mxu0 0
      %1476 = vmatprep.subr.bf16.mxu0 0
      %1477 = vmatpush1.bf16.msra.mxu0 0
      %1478 = vmatprep.subr.bf16.mxu0 0
      %1479 = vmatpush1.bf16.msra.mxu0 0
      %1480 = vmatprep.subr.bf16.mxu0 0
      %1481 = vmatpush1.bf16.msra.mxu0 0
      %1482 = vmatprep.subr.bf16.mxu0 0
      %1483 = vmatpush1.bf16.msra.mxu0 0
      %1484 = vmatprep.subr.bf16.mxu0 0
      %1485 = vmatpush1.bf16.msra.mxu0 0
      %1486 = vmatprep.subr.bf16.mxu0 0
      %1487 = vmatpush1.bf16.msra.mxu0 0
      %1488 = vmatprep.subr.bf16.mxu0 0
      %1489 = vmatpush1.bf16.msra.mxu0 0
      %1490 = vmatprep.subr.bf16.mxu0 0
      %1491 = vmatpush1.bf16.msra.mxu0 0
      %1492 = vmatprep.subr.bf16.mxu0 0
      %1493 = vmatpush1.bf16.msra.mxu0 0
      %1494 = vmatprep.mubr.bf16.mxu0 0
      %1495 = vmatmul.mubr.bf16.gmra.mrb[0].mxu0 %v1460
      %v1496 = vpop.f32.mrb[0].mxu0
      %v1497 = vadd.f32 0.0, %v1496
      %v1498 = vpop.f32.mrb[0].mxu0
      %v1499 = vadd.f32 0.0, %v1498
      %v1500 = vpop.f32.mrb[0].mxu0
      %v1501 = vadd.f32 0.0, %v1500
      %v1502 = vpop.f32.mrb[0].mxu0
      %v1503 = vadd.f32 0.0, %v1502
      %1504 = vdwg.mxu0
      %v1505 = vadd.f32 %v1393, %v1497
      %v1506 = vadd.f32 %v1394, %v1499
      %v1507 = vadd.f32 %v1395, %v1501
      %v1508 = vadd.f32 %v1396, %v1503
      %s1509 = scalar_lea.vmem %s1, 136
      %v1510 = vld [vmem:[%s1509] sm:$0xf]
      %v1511 = vld [vmem:[%s1509 + $0x4] sm:$0xf]
      %v1514 = vunpack.c.l.b16 %v1510
      %v1515 = vunpack.c.l.b16 %v1511
      %v1516 = vpack.c.b16 %v1515, %v1514
      %1517 = vrot.lane.b32.xlu0 %v1433, 94
      %v1518 = vpop.permute.xlu0 %1517
      %1519 = vrot.lane.b32.xlu0 %v1434, 94
      %v1520 = vpop.permute.xlu0 %1519
      %1521 = vrot.lane.b32.xlu0 %v1435, 94
      %v1522 = vpop.permute.xlu0 %1521
      %1523 = vrot.lane.b32.xlu0 %v1436, 94
      %v1524 = vpop.permute.xlu0 %1523
      %1525 = vrot.lane.b32.xlu0 %v1437, 94
      %v1526 = vpop.permute.xlu0 %1525
      %1527 = vrot.lane.b32.xlu0 %v1438, 94
      %v1528 = vpop.permute.xlu0 %1527
      %v1529 = vsel %vm820, %v1518, %v1520
      %v1530 = vsel %vm820, %v1520, %v1522
      %v1531 = vsel %vm820, %v1524, %v1526
      %v1532 = vsel %vm820, %v1526, %v1528
      %v1538 = vsel %vm198, %v1516, 0
      %1540 = vmatprep.subr.bf16.mxu0 %v1530
      %1541 = vmatpush1.bf16.msra.mxu0 %v1529
      %1542 = vmatprep.subr.bf16.mxu0 %v1532
      %1543 = vmatpush1.bf16.msra.mxu0 %v1531
      %1544 = vmatprep.subr.bf16.mxu0 0
      %1545 = vmatpush1.bf16.msra.mxu0 0
      %1546 = vmatprep.subr.bf16.mxu0 0
      %1547 = vmatpush1.bf16.msra.mxu0 0
      %1548 = vmatprep.subr.bf16.mxu0 0
      %1549 = vmatpush1.bf16.msra.mxu0 0
      %1550 = vmatprep.subr.bf16.mxu0 0
      %1551 = vmatpush1.bf16.msra.mxu0 0
      %1552 = vmatprep.subr.bf16.mxu0 0
      %1553 = vmatpush1.bf16.msra.mxu0 0
      %1554 = vmatprep.subr.bf16.mxu0 0
      %1555 = vmatpush1.bf16.msra.mxu0 0
      %1556 = vmatprep.subr.bf16.mxu0 0
      %1557 = vmatpush1.bf16.msra.mxu0 0
      %1558 = vmatprep.subr.bf16.mxu0 0
      %1559 = vmatpush1.bf16.msra.mxu0 0
      %1560 = vmatprep.subr.bf16.mxu0 0
      %1561 = vmatpush1.bf16.msra.mxu0 0
      %1562 = vmatprep.subr.bf16.mxu0 0
      %1563 = vmatpush1.bf16.msra.mxu0 0
      %1564 = vmatprep.subr.bf16.mxu0 0
      %1565 = vmatpush1.bf16.msra.mxu0 0
      %1566 = vmatprep.subr.bf16.mxu0 0
      %1567 = vmatpush1.bf16.msra.mxu0 0
      %1568 = vmatprep.subr.bf16.mxu0 0
      %1569 = vmatpush1.bf16.msra.mxu0 0
      %1570 = vmatprep.subr.bf16.mxu0 0
      %1571 = vmatpush1.bf16.msra.mxu0 0
      %1572 = vmatprep.mubr.bf16.mxu0 0
      %1573 = vmatmul.mubr.bf16.gmra.mrb[0].mxu0 %v1538
      %v1574 = vpop.f32.mrb[0].mxu0
      %v1575 = vadd.f32 0.0, %v1574
      %v1576 = vpop.f32.mrb[0].mxu0
      %v1577 = vadd.f32 0.0, %v1576
      %v1578 = vpop.f32.mrb[0].mxu0
      %v1579 = vadd.f32 0.0, %v1578
      %v1580 = vpop.f32.mrb[0].mxu0
      %v1581 = vadd.f32 0.0, %v1580
      %1582 = vdwg.mxu0
      %v1583 = vadd.f32 %v1505, %v1575
      %v1584 = vadd.f32 %v1506, %v1577
      %v1585 = vadd.f32 %v1507, %v1579
      %v1586 = vadd.f32 %v1508, %v1581
      %s1587 = sadd.s32 %s14, 2
      %s1588 = smul.u32 %s1587, 12
      %s1589 = smul.addr %s1588, 4
      %s1590 = scalar_lea.vmem %s0, %s1589
      %v1591 = vld [vmem:[%s1590] sm:$0xff]
      %v1592 = vld [vmem:[%s1590 + $0xc] sm:$0xff]
      %v1593 = vld [vmem:[%s1590 + $0x18] sm:$0xff]
      %v1594 = vld [vmem:[%s1590 + $0x24] sm:$0xff]
      %s1595 = scalar_lea.vmem %s1, 144
      %v1596 = vld [vmem:[%s1595] sm:$0xf]
      %v1597 = vld [vmem:[%s1595 + $0x4] sm:$0xf]
      %v1600 = vunpack.c.l.b16 %v1596
      %v1601 = vunpack.c.l.b16 %v1597
      %v1602 = vpack.c.b16 %v1601, %v1600
      %v1607 = vunpack.c.l.b16 %v1591
      %v1608 = vunpack.c.h.b16 %v1591
      %v1609 = vunpack.c.l.b16 %v1592
      %v1610 = vunpack.c.h.b16 %v1592
      %v1611 = vunpack.c.l.b16 %v1593
      %v1612 = vunpack.c.h.b16 %v1593
      %v1613 = vunpack.c.l.b16 %v1594
      %v1614 = vunpack.c.h.b16 %v1594
      %v1615 = vpack.c.b16 %v1609, %v1607
      %v1616 = vpack.c.b16 %v1610, %v1608
      %v1617 = vpack.c.b16 %v1613, %v1611
      %v1618 = vpack.c.b16 %v1614, %v1612
      %v1624 = vsel %vm198, %v1602, 0
      %1626 = vmatprep.subr.bf16.mxu0 %v1616
      %1627 = vmatpush1.bf16.msra.mxu0 %v1615
      %1628 = vmatprep.subr.bf16.mxu0 %v1618
      %1629 = vmatpush1.bf16.msra.mxu0 %v1617
      %1630 = vmatprep.subr.bf16.mxu0 0
      %1631 = vmatpush1.bf16.msra.mxu0 0
      %1632 = vmatprep.subr.bf16.mxu0 0
      %1633 = vmatpush1.bf16.msra.mxu0 0
      %1634 = vmatprep.subr.bf16.mxu0 0
      %1635 = vmatpush1.bf16.msra.mxu0 0
      %1636 = vmatprep.subr.bf16.mxu0 0
      %1637 = vmatpush1.bf16.msra.mxu0 0
      %1638 = vmatprep.subr.bf16.mxu0 0
      %1639 = vmatpush1.bf16.msra.mxu0 0
      %1640 = vmatprep.subr.bf16.mxu0 0
      %1641 = vmatpush1.bf16.msra.mxu0 0
      %1642 = vmatprep.subr.bf16.mxu0 0
      %1643 = vmatpush1.bf16.msra.mxu0 0
      %1644 = vmatprep.subr.bf16.mxu0 0
      %1645 = vmatpush1.bf16.msra.mxu0 0
      %1646 = vmatprep.subr.bf16.mxu0 0
      %1647 = vmatpush1.bf16.msra.mxu0 0
      %1648 = vmatprep.subr.bf16.mxu0 0
      %1649 = vmatpush1.bf16.msra.mxu0 0
      %1650 = vmatprep.subr.bf16.mxu0 0
      %1651 = vmatpush1.bf16.msra.mxu0 0
      %1652 = vmatprep.subr.bf16.mxu0 0
      %1653 = vmatpush1.bf16.msra.mxu0 0
      %1654 = vmatprep.subr.bf16.mxu0 0
      %1655 = vmatpush1.bf16.msra.mxu0 0
      %1656 = vmatprep.subr.bf16.mxu0 0
      %1657 = vmatpush1.bf16.msra.mxu0 0
      %1658 = vmatprep.mubr.bf16.mxu0 0
      %1659 = vmatmul.mubr.bf16.gmra.mrb[0].mxu0 %v1624
      %v1660 = vpop.f32.mrb[0].mxu0
      %v1661 = vadd.f32 0.0, %v1660
      %v1662 = vpop.f32.mrb[0].mxu0
      %v1663 = vadd.f32 0.0, %v1662
      %v1664 = vpop.f32.mrb[0].mxu0
      %v1665 = vadd.f32 0.0, %v1664
      %v1666 = vpop.f32.mrb[0].mxu0
      %v1667 = vadd.f32 0.0, %v1666
      %1668 = vdwg.mxu0
      %v1669 = vadd.f32 %v1583, %v1661
      %v1670 = vadd.f32 %v1584, %v1663
      %v1671 = vadd.f32 %v1585, %v1665
      %v1672 = vadd.f32 %v1586, %v1667
      %s1673 = scalar_lea.vmem %s1, 152
      %v1674 = vld [vmem:[%s1673] sm:$0xf]
      %v1675 = vld [vmem:[%s1673 + $0x4] sm:$0xf]
      %v1678 = vunpack.c.l.b16 %v1674
      %v1679 = vunpack.c.l.b16 %v1675
      %v1680 = vpack.c.b16 %v1679, %v1678
      %1681 = vrot.lane.b32.xlu0 %v1615, 127
      %v1682 = vpop.permute.xlu0 %1681
      %1683 = vrot.lane.b32.xlu0 %v1616, 127
      %v1684 = vpop.permute.xlu0 %1683
      %1685 = vrot.lane.b32.xlu0 %v1617, 127
      %v1686 = vpop.permute.xlu0 %1685
      %1687 = vrot.lane.b32.xlu0 %v1618, 127
      %v1688 = vpop.permute.xlu0 %1687
      %v1689 = vsel %vm265, %v1682, %v1684
      %v1690 = vsel %vm265, %v1686, %v1688
      %v1696 = vsel %vm198, %v1680, 0
      %1698 = vmatprep.subr.bf16.mxu0 %v1684
      %1699 = vmatpush1.bf16.msra.mxu0 %v1689
      %1700 = vmatprep.subr.bf16.mxu0 %v1688
      %1701 = vmatpush1.bf16.msra.mxu0 %v1690
      %1702 = vmatprep.subr.bf16.mxu0 0
      %1703 = vmatpush1.bf16.msra.mxu0 0
      %1704 = vmatprep.subr.bf16.mxu0 0
      %1705 = vmatpush1.bf16.msra.mxu0 0
      %1706 = vmatprep.subr.bf16.mxu0 0
      %1707 = vmatpush1.bf16.msra.mxu0 0
      %1708 = vmatprep.subr.bf16.mxu0 0
      %1709 = vmatpush1.bf16.msra.mxu0 0
      %1710 = vmatprep.subr.bf16.mxu0 0
      %1711 = vmatpush1.bf16.msra.mxu0 0
      %1712 = vmatprep.subr.bf16.mxu0 0
      %1713 = vmatpush1.bf16.msra.mxu0 0
      %1714 = vmatprep.subr.bf16.mxu0 0
      %1715 = vmatpush1.bf16.msra.mxu0 0
      %1716 = vmatprep.subr.bf16.mxu0 0
      %1717 = vmatpush1.bf16.msra.mxu0 0
      %1718 = vmatprep.subr.bf16.mxu0 0
      %1719 = vmatpush1.bf16.msra.mxu0 0
      %1720 = vmatprep.subr.bf16.mxu0 0
      %1721 = vmatpush1.bf16.msra.mxu0 0
      %1722 = vmatprep.subr.bf16.mxu0 0
      %1723 = vmatpush1.bf16.msra.mxu0 0
      %1724 = vmatprep.subr.bf16.mxu0 0
      %1725 = vmatpush1.bf16.msra.mxu0 0
      %1726 = vmatprep.subr.bf16.mxu0 0
      %1727 = vmatpush1.bf16.msra.mxu0 0
      %1728 = vmatprep.subr.bf16.mxu0 0
      %1729 = vmatpush1.bf16.msra.mxu0 0
      %1730 = vmatprep.mubr.bf16.mxu0 0
      %1731 = vmatmul.mubr.bf16.gmra.mrb[0].mxu0 %v1696
      %v1732 = vpop.f32.mrb[0].mxu0
      %v1733 = vadd.f32 0.0, %v1732
      %v1734 = vpop.f32.mrb[0].mxu0
      %v1735 = vadd.f32 0.0, %v1734
      %v1736 = vpop.f32.mrb[0].mxu0
      %v1737 = vadd.f32 0.0, %v1736
      %v1738 = vpop.f32.mrb[0].mxu0
      %v1739 = vadd.f32 0.0, %v1738
      %1740 = vdwg.mxu0
      %v1741 = vadd.f32 %v1669, %v1733
      %v1742 = vadd.f32 %v1670, %v1735
      %v1743 = vadd.f32 %v1671, %v1737
      %v1744 = vadd.f32 %v1672, %v1739
      %s1745 = scalar_lea.vmem %s1, 160
      %v1746 = vld [vmem:[%s1745] sm:$0xf]
      %v1747 = vld [vmem:[%s1745 + $0x4] sm:$0xf]
      %v1750 = vunpack.c.l.b16 %v1746
      %v1751 = vunpack.c.l.b16 %v1747
      %v1752 = vpack.c.b16 %v1751, %v1750
      %1753 = vrot.lane.b32.xlu0 %v1615, 126
      %v1754 = vpop.permute.xlu0 %1753
      %1755 = vrot.lane.b32.xlu0 %v1616, 126
      %v1756 = vpop.permute.xlu0 %1755
      %1757 = vrot.lane.b32.xlu0 %v1617, 126
      %v1758 = vpop.permute.xlu0 %1757
      %1759 = vrot.lane.b32.xlu0 %v1618, 126
      %v1760 = vpop.permute.xlu0 %1759
      %v1761 = vsel %vm338, %v1754, %v1756
      %v1762 = vsel %vm338, %v1758, %v1760
      %v1768 = vsel %vm198, %v1752, 0
      %1770 = vmatprep.subr.bf16.mxu0 %v1756
      %1771 = vmatpush1.bf16.msra.mxu0 %v1761
      %1772 = vmatprep.subr.bf16.mxu0 %v1760
      %1773 = vmatpush1.bf16.msra.mxu0 %v1762
      %1774 = vmatprep.subr.bf16.mxu0 0
      %1775 = vmatpush1.bf16.msra.mxu0 0
      %1776 = vmatprep.subr.bf16.mxu0 0
      %1777 = vmatpush1.bf16.msra.mxu0 0
      %1778 = vmatprep.subr.bf16.mxu0 0
      %1779 = vmatpush1.bf16.msra.mxu0 0
      %1780 = vmatprep.subr.bf16.mxu0 0
      %1781 = vmatpush1.bf16.msra.mxu0 0
      %1782 = vmatprep.subr.bf16.mxu0 0
      %1783 = vmatpush1.bf16.msra.mxu0 0
      %1784 = vmatprep.subr.bf16.mxu0 0
      %1785 = vmatpush1.bf16.msra.mxu0 0
      %1786 = vmatprep.subr.bf16.mxu0 0
      %1787 = vmatpush1.bf16.msra.mxu0 0
      %1788 = vmatprep.subr.bf16.mxu0 0
      %1789 = vmatpush1.bf16.msra.mxu0 0
      %1790 = vmatprep.subr.bf16.mxu0 0
      %1791 = vmatpush1.bf16.msra.mxu0 0
      %1792 = vmatprep.subr.bf16.mxu0 0
      %1793 = vmatpush1.bf16.msra.mxu0 0
      %1794 = vmatprep.subr.bf16.mxu0 0
      %1795 = vmatpush1.bf16.msra.mxu0 0
      %1796 = vmatprep.subr.bf16.mxu0 0
      %1797 = vmatpush1.bf16.msra.mxu0 0
      %1798 = vmatprep.subr.bf16.mxu0 0
      %1799 = vmatpush1.bf16.msra.mxu0 0
      %1800 = vmatprep.subr.bf16.mxu0 0
      %1801 = vmatpush1.bf16.msra.mxu0 0
      %1802 = vmatprep.mubr.bf16.mxu0 0
      %1803 = vmatmul.mubr.bf16.gmra.mrb[0].mxu0 %v1768
      %v1804 = vpop.f32.mrb[0].mxu0
      %v1805 = vadd.f32 0.0, %v1804
      %v1806 = vpop.f32.mrb[0].mxu0
      %v1807 = vadd.f32 0.0, %v1806
      %v1808 = vpop.f32.mrb[0].mxu0
      %v1809 = vadd.f32 0.0, %v1808
      %v1810 = vpop.f32.mrb[0].mxu0
      %v1811 = vadd.f32 0.0, %v1810
      %1812 = vdwg.mxu0
      %v1813 = vadd.f32 %v1741, %v1805
      %v1814 = vadd.f32 %v1742, %v1807
      %v1815 = vadd.f32 %v1743, %v1809
      %v1816 = vadd.f32 %v1744, %v1811
      %s1817 = scalar_lea.vmem %s1, 168
      %v1818 = vld [vmem:[%s1817] sm:$0xf]
      %v1819 = vld [vmem:[%s1817 + $0x4] sm:$0xf]
      %v1822 = vunpack.c.l.b16 %v1818
      %v1823 = vunpack.c.l.b16 %v1819
      %v1824 = vpack.c.b16 %v1823, %v1822
      %1825 = vrot.lane.b32.xlu0 %v1615, 112
      %v1826 = vpop.permute.xlu0 %1825
      %1827 = vrot.lane.b32.xlu0 %v1616, 112
      %v1828 = vpop.permute.xlu0 %1827
      %1829 = vrot.lane.b32.xlu0 %v1617, 112
      %v1830 = vpop.permute.xlu0 %1829
      %1831 = vrot.lane.b32.xlu0 %v1618, 112
      %v1832 = vpop.permute.xlu0 %1831
      %v1833 = vsel %vm411, %v1826, %v1828
      %v1834 = vsel %vm411, %v1830, %v1832
      %v1840 = vsel %vm198, %v1824, 0
      %1842 = vmatprep.subr.bf16.mxu0 %v1828
      %1843 = vmatpush1.bf16.msra.mxu0 %v1833
      %1844 = vmatprep.subr.bf16.mxu0 %v1832
      %1845 = vmatpush1.bf16.msra.mxu0 %v1834
      %1846 = vmatprep.subr.bf16.mxu0 0
      %1847 = vmatpush1.bf16.msra.mxu0 0
      %1848 = vmatprep.subr.bf16.mxu0 0
      %1849 = vmatpush1.bf16.msra.mxu0 0
      %1850 = vmatprep.subr.bf16.mxu0 0
      %1851 = vmatpush1.bf16.msra.mxu0 0
      %1852 = vmatprep.subr.bf16.mxu0 0
      %1853 = vmatpush1.bf16.msra.mxu0 0
      %1854 = vmatprep.subr.bf16.mxu0 0
      %1855 = vmatpush1.bf16.msra.mxu0 0
      %1856 = vmatprep.subr.bf16.mxu0 0
      %1857 = vmatpush1.bf16.msra.mxu0 0
      %1858 = vmatprep.subr.bf16.mxu0 0
      %1859 = vmatpush1.bf16.msra.mxu0 0
      %1860 = vmatprep.subr.bf16.mxu0 0
      %1861 = vmatpush1.bf16.msra.mxu0 0
      %1862 = vmatprep.subr.bf16.mxu0 0
      %1863 = vmatpush1.bf16.msra.mxu0 0
      %1864 = vmatprep.subr.bf16.mxu0 0
      %1865 = vmatpush1.bf16.msra.mxu0 0
      %1866 = vmatprep.subr.bf16.mxu0 0
      %1867 = vmatpush1.bf16.msra.mxu0 0
      %1868 = vmatprep.subr.bf16.mxu0 0
      %1869 = vmatpush1.bf16.msra.mxu0 0
      %1870 = vmatprep.subr.bf16.mxu0 0
      %1871 = vmatpush1.bf16.msra.mxu0 0
      %1872 = vmatprep.subr.bf16.mxu0 0
      %1873 = vmatpush1.bf16.msra.mxu0 0
      %1874 = vmatprep.mubr.bf16.mxu0 0
      %1875 = vmatmul.mubr.bf16.gmra.mrb[0].mxu0 %v1840
      %v1876 = vpop.f32.mrb[0].mxu0
      %v1877 = vadd.f32 0.0, %v1876
      %v1878 = vpop.f32.mrb[0].mxu0
      %v1879 = vadd.f32 0.0, %v1878
      %v1880 = vpop.f32.mrb[0].mxu0
      %v1881 = vadd.f32 0.0, %v1880
      %v1882 = vpop.f32.mrb[0].mxu0
      %v1883 = vadd.f32 0.0, %v1882
      %1884 = vdwg.mxu0
      %v1885 = vadd.f32 %v1813, %v1877
      %v1886 = vadd.f32 %v1814, %v1879
      %v1887 = vadd.f32 %v1815, %v1881
      %v1888 = vadd.f32 %v1816, %v1883
      %s1889 = scalar_lea.vmem %s1, 176
      %v1890 = vld [vmem:[%s1889] sm:$0xf]
      %v1891 = vld [vmem:[%s1889 + $0x4] sm:$0xf]
      %v1894 = vunpack.c.l.b16 %v1890
      %v1895 = vunpack.c.l.b16 %v1891
      %v1896 = vpack.c.b16 %v1895, %v1894
      %1897 = vrot.lane.b32.xlu0 %v1615, 111
      %v1898 = vpop.permute.xlu0 %1897
      %1899 = vrot.lane.b32.xlu0 %v1616, 111
      %v1900 = vpop.permute.xlu0 %1899
      %1901 = vrot.lane.b32.xlu0 %v1617, 111
      %v1902 = vpop.permute.xlu0 %1901
      %1903 = vrot.lane.b32.xlu0 %v1618, 111
      %v1904 = vpop.permute.xlu0 %1903
      %v1905 = vsel %vm484, %v1898, %v1900
      %v1906 = vsel %vm484, %v1902, %v1904
      %v1912 = vsel %vm198, %v1896, 0
      %1914 = vmatprep.subr.bf16.mxu0 %v1900
      %1915 = vmatpush1.bf16.msra.mxu0 %v1905
      %1916 = vmatprep.subr.bf16.mxu0 %v1904
      %1917 = vmatpush1.bf16.msra.mxu0 %v1906
      %1918 = vmatprep.subr.bf16.mxu0 0
      %1919 = vmatpush1.bf16.msra.mxu0 0
      %1920 = vmatprep.subr.bf16.mxu0 0
      %1921 = vmatpush1.bf16.msra.mxu0 0
      %1922 = vmatprep.subr.bf16.mxu0 0
      %1923 = vmatpush1.bf16.msra.mxu0 0
      %1924 = vmatprep.subr.bf16.mxu0 0
      %1925 = vmatpush1.bf16.msra.mxu0 0
      %1926 = vmatprep.subr.bf16.mxu0 0
      %1927 = vmatpush1.bf16.msra.mxu0 0
      %1928 = vmatprep.subr.bf16.mxu0 0
      %1929 = vmatpush1.bf16.msra.mxu0 0
      %1930 = vmatprep.subr.bf16.mxu0 0
      %1931 = vmatpush1.bf16.msra.mxu0 0
      %1932 = vmatprep.subr.bf16.mxu0 0
      %1933 = vmatpush1.bf16.msra.mxu0 0
      %1934 = vmatprep.subr.bf16.mxu0 0
      %1935 = vmatpush1.bf16.msra.mxu0 0
      %1936 = vmatprep.subr.bf16.mxu0 0
      %1937 = vmatpush1.bf16.msra.mxu0 0
      %1938 = vmatprep.subr.bf16.mxu0 0
      %1939 = vmatpush1.bf16.msra.mxu0 0
      %1940 = vmatprep.subr.bf16.mxu0 0
      %1941 = vmatpush1.bf16.msra.mxu0 0
      %1942 = vmatprep.subr.bf16.mxu0 0
      %1943 = vmatpush1.bf16.msra.mxu0 0
      %1944 = vmatprep.subr.bf16.mxu0 0
      %1945 = vmatpush1.bf16.msra.mxu0 0
      %1946 = vmatprep.mubr.bf16.mxu0 0
      %1947 = vmatmul.mubr.bf16.gmra.mrb[0].mxu0 %v1912
      %v1948 = vpop.f32.mrb[0].mxu0
      %v1949 = vadd.f32 0.0, %v1948
      %v1950 = vpop.f32.mrb[0].mxu0
      %v1951 = vadd.f32 0.0, %v1950
      %v1952 = vpop.f32.mrb[0].mxu0
      %v1953 = vadd.f32 0.0, %v1952
      %v1954 = vpop.f32.mrb[0].mxu0
      %v1955 = vadd.f32 0.0, %v1954
      %1956 = vdwg.mxu0
      %v1957 = vadd.f32 %v1885, %v1949
      %v1958 = vadd.f32 %v1886, %v1951
      %v1959 = vadd.f32 %v1887, %v1953
      %v1960 = vadd.f32 %v1888, %v1955
      %s1961 = scalar_lea.vmem %s1, 184
      %v1962 = vld [vmem:[%s1961] sm:$0xf]
      %v1963 = vld [vmem:[%s1961 + $0x4] sm:$0xf]
      %v1966 = vunpack.c.l.b16 %v1962
      %v1967 = vunpack.c.l.b16 %v1963
      %v1968 = vpack.c.b16 %v1967, %v1966
      %1969 = vrot.lane.b32.xlu0 %v1615, 110
      %v1970 = vpop.permute.xlu0 %1969
      %1971 = vrot.lane.b32.xlu0 %v1616, 110
      %v1972 = vpop.permute.xlu0 %1971
      %1973 = vrot.lane.b32.xlu0 %v1617, 110
      %v1974 = vpop.permute.xlu0 %1973
      %1975 = vrot.lane.b32.xlu0 %v1618, 110
      %v1976 = vpop.permute.xlu0 %1975
      %v1977 = vsel %vm557, %v1970, %v1972
      %v1978 = vsel %vm557, %v1974, %v1976
      %v1984 = vsel %vm198, %v1968, 0
      %1986 = vmatprep.subr.bf16.mxu0 %v1972
      %1987 = vmatpush1.bf16.msra.mxu0 %v1977
      %1988 = vmatprep.subr.bf16.mxu0 %v1976
      %1989 = vmatpush1.bf16.msra.mxu0 %v1978
      %1990 = vmatprep.subr.bf16.mxu0 0
      %1991 = vmatpush1.bf16.msra.mxu0 0
      %1992 = vmatprep.subr.bf16.mxu0 0
      %1993 = vmatpush1.bf16.msra.mxu0 0
      %1994 = vmatprep.subr.bf16.mxu0 0
      %1995 = vmatpush1.bf16.msra.mxu0 0
      %1996 = vmatprep.subr.bf16.mxu0 0
      %1997 = vmatpush1.bf16.msra.mxu0 0
      %1998 = vmatprep.subr.bf16.mxu0 0
      %1999 = vmatpush1.bf16.msra.mxu0 0
      %2000 = vmatprep.subr.bf16.mxu0 0
      %2001 = vmatpush1.bf16.msra.mxu0 0
      %2002 = vmatprep.subr.bf16.mxu0 0
      %2003 = vmatpush1.bf16.msra.mxu0 0
      %2004 = vmatprep.subr.bf16.mxu0 0
      %2005 = vmatpush1.bf16.msra.mxu0 0
      %2006 = vmatprep.subr.bf16.mxu0 0
      %2007 = vmatpush1.bf16.msra.mxu0 0
      %2008 = vmatprep.subr.bf16.mxu0 0
      %2009 = vmatpush1.bf16.msra.mxu0 0
      %2010 = vmatprep.subr.bf16.mxu0 0
      %2011 = vmatpush1.bf16.msra.mxu0 0
      %2012 = vmatprep.subr.bf16.mxu0 0
      %2013 = vmatpush1.bf16.msra.mxu0 0
      %2014 = vmatprep.subr.bf16.mxu0 0
      %2015 = vmatpush1.bf16.msra.mxu0 0
      %2016 = vmatprep.subr.bf16.mxu0 0
      %2017 = vmatpush1.bf16.msra.mxu0 0
      %2018 = vmatprep.mubr.bf16.mxu0 0
      %2019 = vmatmul.mubr.bf16.gmra.mrb[0].mxu0 %v1984
      %v2020 = vpop.f32.mrb[0].mxu0
      %v2021 = vadd.f32 0.0, %v2020
      %v2022 = vpop.f32.mrb[0].mxu0
      %v2023 = vadd.f32 0.0, %v2022
      %v2024 = vpop.f32.mrb[0].mxu0
      %v2025 = vadd.f32 0.0, %v2024
      %v2026 = vpop.f32.mrb[0].mxu0
      %v2027 = vadd.f32 0.0, %v2026
      %2028 = vdwg.mxu0
      %v2029 = vadd.f32 %v1957, %v2021
      %v2030 = vadd.f32 %v1958, %v2023
      %v2031 = vadd.f32 %v1959, %v2025
      %v2032 = vadd.f32 %v1960, %v2027
      %s2033 = scalar_lea.vmem %s1, 192
      %v2034 = vld [vmem:[%s2033] sm:$0xf]
      %v2035 = vld [vmem:[%s2033 + $0x4] sm:$0xf]
      %v2038 = vunpack.c.l.b16 %v2034
      %v2039 = vunpack.c.l.b16 %v2035
      %v2040 = vpack.c.b16 %v2039, %v2038
      %2041 = vrot.lane.b32.xlu0 %v1615, 96
      %v2042 = vpop.permute.xlu0 %2041
      %2043 = vrot.lane.b32.xlu0 %v1616, 96
      %v2044 = vpop.permute.xlu0 %2043
      %2045 = vrot.lane.b32.xlu0 %v1617, 96
      %v2046 = vpop.permute.xlu0 %2045
      %2047 = vrot.lane.b32.xlu0 %v1618, 96
      %v2048 = vpop.permute.xlu0 %2047
      %v2049 = vsel %vm630, %v2042, %v2044
      %v2050 = vsel %vm630, %v2046, %v2048
      %v2056 = vsel %vm198, %v2040, 0
      %2058 = vmatprep.subr.bf16.mxu0 %v2044
      %2059 = vmatpush1.bf16.msra.mxu0 %v2049
      %2060 = vmatprep.subr.bf16.mxu0 %v2048
      %2061 = vmatpush1.bf16.msra.mxu0 %v2050
      %2062 = vmatprep.subr.bf16.mxu0 0
      %2063 = vmatpush1.bf16.msra.mxu0 0
      %2064 = vmatprep.subr.bf16.mxu0 0
      %2065 = vmatpush1.bf16.msra.mxu0 0
      %2066 = vmatprep.subr.bf16.mxu0 0
      %2067 = vmatpush1.bf16.msra.mxu0 0
      %2068 = vmatprep.subr.bf16.mxu0 0
      %2069 = vmatpush1.bf16.msra.mxu0 0
      %2070 = vmatprep.subr.bf16.mxu0 0
      %2071 = vmatpush1.bf16.msra.mxu0 0
      %2072 = vmatprep.subr.bf16.mxu0 0
      %2073 = vmatpush1.bf16.msra.mxu0 0
      %2074 = vmatprep.subr.bf16.mxu0 0
      %2075 = vmatpush1.bf16.msra.mxu0 0
      %2076 = vmatprep.subr.bf16.mxu0 0
      %2077 = vmatpush1.bf16.msra.mxu0 0
      %2078 = vmatprep.subr.bf16.mxu0 0
      %2079 = vmatpush1.bf16.msra.mxu0 0
      %2080 = vmatprep.subr.bf16.mxu0 0
      %2081 = vmatpush1.bf16.msra.mxu0 0
      %2082 = vmatprep.subr.bf16.mxu0 0
      %2083 = vmatpush1.bf16.msra.mxu0 0
      %2084 = vmatprep.subr.bf16.mxu0 0
      %2085 = vmatpush1.bf16.msra.mxu0 0
      %2086 = vmatprep.subr.bf16.mxu0 0
      %2087 = vmatpush1.bf16.msra.mxu0 0
      %2088 = vmatprep.subr.bf16.mxu0 0
      %2089 = vmatpush1.bf16.msra.mxu0 0
      %2090 = vmatprep.mubr.bf16.mxu0 0
      %2091 = vmatmul.mubr.bf16.gmra.mrb[0].mxu0 %v2056
      %v2092 = vpop.f32.mrb[0].mxu0
      %v2093 = vadd.f32 0.0, %v2092
      %v2094 = vpop.f32.mrb[0].mxu0
      %v2095 = vadd.f32 0.0, %v2094
      %v2096 = vpop.f32.mrb[0].mxu0
      %v2097 = vadd.f32 0.0, %v2096
      %v2098 = vpop.f32.mrb[0].mxu0
      %v2099 = vadd.f32 0.0, %v2098
      %2100 = vdwg.mxu0
      %v2101 = vadd.f32 %v2029, %v2093
      %v2102 = vadd.f32 %v2030, %v2095
      %v2103 = vadd.f32 %v2031, %v2097
      %v2104 = vadd.f32 %v2032, %v2099
      %v2105 = vld [vmem:[%s1590] sm:$0xff]
      %v2106 = vld [vmem:[%s1590 + $0x8] sm:$0xf]
      %v2107 = vld [vmem:[%s1590 + $0xc] sm:$0xff]
      %v2108 = vld [vmem:[%s1590 + $0x14] sm:$0xf]
      %v2109 = vld [vmem:[%s1590 + $0x18] sm:$0xff]
      %v2110 = vld [vmem:[%s1590 + $0x20] sm:$0xf]
      %v2111 = vld [vmem:[%s1590 + $0x24] sm:$0xff]
      %v2112 = vld [vmem:[%s1590 + $0x2c] sm:$0xf]
      %s2113 = scalar_lea.vmem %s1, 200
      %v2114 = vld [vmem:[%s2113] sm:$0xf]
      %v2115 = vld [vmem:[%s2113 + $0x4] sm:$0xf]
      %v2118 = vunpack.c.l.b16 %v2114
      %v2119 = vunpack.c.l.b16 %v2115
      %v2120 = vpack.c.b16 %v2119, %v2118
      %v2129 = vunpack.c.l.b16 %v2105
      %v2130 = vunpack.c.h.b16 %v2105
      %v2131 = vunpack.c.l.b16 %v2106
      %v2132 = vunpack.c.l.b16 %v2107
      %v2133 = vunpack.c.h.b16 %v2107
      %v2134 = vunpack.c.l.b16 %v2108
      %v2135 = vunpack.c.l.b16 %v2109
      %v2136 = vunpack.c.h.b16 %v2109
      %v2137 = vunpack.c.l.b16 %v2110
      %v2138 = vunpack.c.l.b16 %v2111
      %v2139 = vunpack.c.h.b16 %v2111
      %v2140 = vunpack.c.l.b16 %v2112
      %v2141 = vpack.c.b16 %v2132, %v2129
      %v2142 = vpack.c.b16 %v2133, %v2130
      %v2143 = vpack.c.b16 %v2134, %v2131
      %v2144 = vpack.c.b16 %v2138, %v2135
      %v2145 = vpack.c.b16 %v2139, %v2136
      %v2146 = vpack.c.b16 %v2140, %v2137
      %2147 = vrot.lane.b32.xlu0 %v2141, 95
      %v2148 = vpop.permute.xlu0 %2147
      %2149 = vrot.lane.b32.xlu0 %v2142, 95
      %v2150 = vpop.permute.xlu0 %2149
      %2151 = vrot.lane.b32.xlu0 %v2143, 95
      %v2152 = vpop.permute.xlu0 %2151
      %2153 = vrot.lane.b32.xlu0 %v2144, 95
      %v2154 = vpop.permute.xlu0 %2153
      %2155 = vrot.lane.b32.xlu0 %v2145, 95
      %v2156 = vpop.permute.xlu0 %2155
      %2157 = vrot.lane.b32.xlu0 %v2146, 95
      %v2158 = vpop.permute.xlu0 %2157
      %v2159 = vsel %vm741, %v2148, %v2150
      %v2160 = vsel %vm741, %v2150, %v2152
      %v2161 = vsel %vm741, %v2154, %v2156
      %v2162 = vsel %vm741, %v2156, %v2158
      %v2168 = vsel %vm198, %v2120, 0
      %2170 = vmatprep.subr.bf16.mxu0 %v2160
      %2171 = vmatpush1.bf16.msra.mxu0 %v2159
      %2172 = vmatprep.subr.bf16.mxu0 %v2162
      %2173 = vmatpush1.bf16.msra.mxu0 %v2161
      %2174 = vmatprep.subr.bf16.mxu0 0
      %2175 = vmatpush1.bf16.msra.mxu0 0
      %2176 = vmatprep.subr.bf16.mxu0 0
      %2177 = vmatpush1.bf16.msra.mxu0 0
      %2178 = vmatprep.subr.bf16.mxu0 0
      %2179 = vmatpush1.bf16.msra.mxu0 0
      %2180 = vmatprep.subr.bf16.mxu0 0
      %2181 = vmatpush1.bf16.msra.mxu0 0
      %2182 = vmatprep.subr.bf16.mxu0 0
      %2183 = vmatpush1.bf16.msra.mxu0 0
      %2184 = vmatprep.subr.bf16.mxu0 0
      %2185 = vmatpush1.bf16.msra.mxu0 0
      %2186 = vmatprep.subr.bf16.mxu0 0
      %2187 = vmatpush1.bf16.msra.mxu0 0
      %2188 = vmatprep.subr.bf16.mxu0 0
      %2189 = vmatpush1.bf16.msra.mxu0 0
      %2190 = vmatprep.subr.bf16.mxu0 0
      %2191 = vmatpush1.bf16.msra.mxu0 0
      %2192 = vmatprep.subr.bf16.mxu0 0
      %2193 = vmatpush1.bf16.msra.mxu0 0
      %2194 = vmatprep.subr.bf16.mxu0 0
      %2195 = vmatpush1.bf16.msra.mxu0 0
      %2196 = vmatprep.subr.bf16.mxu0 0
      %2197 = vmatpush1.bf16.msra.mxu0 0
      %2198 = vmatprep.subr.bf16.mxu0 0
      %2199 = vmatpush1.bf16.msra.mxu0 0
      %2200 = vmatprep.subr.bf16.mxu0 0
      %2201 = vmatpush1.bf16.msra.mxu0 0
      %2202 = vmatprep.mubr.bf16.mxu0 0
      %2203 = vmatmul.mubr.bf16.gmra.mrb[0].mxu0 %v2168
      %v2204 = vpop.f32.mrb[0].mxu0
      %v2205 = vadd.f32 0.0, %v2204
      %v2206 = vpop.f32.mrb[0].mxu0
      %v2207 = vadd.f32 0.0, %v2206
      %v2208 = vpop.f32.mrb[0].mxu0
      %v2209 = vadd.f32 0.0, %v2208
      %v2210 = vpop.f32.mrb[0].mxu0
      %v2211 = vadd.f32 0.0, %v2210
      %2212 = vdwg.mxu0
      %v2213 = vadd.f32 %v2101, %v2205
      %v2214 = vadd.f32 %v2102, %v2207
      %v2215 = vadd.f32 %v2103, %v2209
      %v2216 = vadd.f32 %v2104, %v2211
      %s2217 = scalar_lea.vmem %s1, 208
      %v2218 = vld [vmem:[%s2217] sm:$0xf]
      %v2219 = vld [vmem:[%s2217 + $0x4] sm:$0xf]
      %v2222 = vunpack.c.l.b16 %v2218
      %v2223 = vunpack.c.l.b16 %v2219
      %v2224 = vpack.c.b16 %v2223, %v2222
      %2225 = vrot.lane.b32.xlu0 %v2141, 94
      %v2226 = vpop.permute.xlu0 %2225
      %2227 = vrot.lane.b32.xlu0 %v2142, 94
      %v2228 = vpop.permute.xlu0 %2227
      %2229 = vrot.lane.b32.xlu0 %v2143, 94
      %v2230 = vpop.permute.xlu0 %2229
      %2231 = vrot.lane.b32.xlu0 %v2144, 94
      %v2232 = vpop.permute.xlu0 %2231
      %2233 = vrot.lane.b32.xlu0 %v2145, 94
      %v2234 = vpop.permute.xlu0 %2233
      %2235 = vrot.lane.b32.xlu0 %v2146, 94
      %v2236 = vpop.permute.xlu0 %2235
      %v2237 = vsel %vm820, %v2226, %v2228
      %v2238 = vsel %vm820, %v2228, %v2230
      %v2239 = vsel %vm820, %v2232, %v2234
      %v2240 = vsel %vm820, %v2234, %v2236
      %v2246 = vsel %vm198, %v2224, 0
      %2248 = vmatprep.subr.bf16.mxu0 %v2238
      %2249 = vmatpush1.bf16.msra.mxu0 %v2237
      %2250 = vmatprep.subr.bf16.mxu0 %v2240
      %2251 = vmatpush1.bf16.msra.mxu0 %v2239
      %2252 = vmatprep.subr.bf16.mxu0 0
      %2253 = vmatpush1.bf16.msra.mxu0 0
      %2254 = vmatprep.subr.bf16.mxu0 0
      %2255 = vmatpush1.bf16.msra.mxu0 0
      %2256 = vmatprep.subr.bf16.mxu0 0
      %2257 = vmatpush1.bf16.msra.mxu0 0
      %2258 = vmatprep.subr.bf16.mxu0 0
      %2259 = vmatpush1.bf16.msra.mxu0 0
      %2260 = vmatprep.subr.bf16.mxu0 0
      %2261 = vmatpush1.bf16.msra.mxu0 0
      %2262 = vmatprep.subr.bf16.mxu0 0
      %2263 = vmatpush1.bf16.msra.mxu0 0
      %2264 = vmatprep.subr.bf16.mxu0 0
      %2265 = vmatpush1.bf16.msra.mxu0 0
      %2266 = vmatprep.subr.bf16.mxu0 0
      %2267 = vmatpush1.bf16.msra.mxu0 0
      %2268 = vmatprep.subr.bf16.mxu0 0
      %2269 = vmatpush1.bf16.msra.mxu0 0
      %2270 = vmatprep.subr.bf16.mxu0 0
      %2271 = vmatpush1.bf16.msra.mxu0 0
      %2272 = vmatprep.subr.bf16.mxu0 0
      %2273 = vmatpush1.bf16.msra.mxu0 0
      %2274 = vmatprep.subr.bf16.mxu0 0
      %2275 = vmatpush1.bf16.msra.mxu0 0
      %2276 = vmatprep.subr.bf16.mxu0 0
      %2277 = vmatpush1.bf16.msra.mxu0 0
      %2278 = vmatprep.subr.bf16.mxu0 0
      %2279 = vmatpush1.bf16.msra.mxu0 0
      %2280 = vmatprep.mubr.bf16.mxu0 0
      %2281 = vmatmul.mubr.bf16.gmra.mrb[0].mxu0 %v2246
      %v2282 = vpop.f32.mrb[0].mxu0
      %v2283 = vadd.f32 0.0, %v2282
      %v2284 = vpop.f32.mrb[0].mxu0
      %v2285 = vadd.f32 0.0, %v2284
      %v2286 = vpop.f32.mrb[0].mxu0
      %v2287 = vadd.f32 0.0, %v2286
      %v2288 = vpop.f32.mrb[0].mxu0
      %v2289 = vadd.f32 0.0, %v2288
      %2290 = vdwg.mxu0
      %v2291 = vadd.f32 %v2213, %v2283
      %v2292 = vadd.f32 %v2214, %v2285
      %v2293 = vadd.f32 %v2215, %v2287
      %v2294 = vadd.f32 %v2216, %v2289
      %2295 = vst [vmem:[%s150] sm:$0xff] %v2291
      %vm2296 = vcmask 785408
      %2297 = vst.msk [vmem:[%s150 + $0x8] sm:$0xff] %vm2296, %v2292
      %2298 = vst [vmem:[%s150 + $0x10] sm:$0xff] %v2293
      %2299 = vst.msk [vmem:[%s150 + $0x18] sm:$0xff] %vm2296, %v2294
      %p2300 = scmp.lt.s32.totalorder %s14, 5
      %s2301 = scalar_select %p2300, %s14, 5
      %s2302 = smul.addr %s2301, 4
      %s2303 = smul.addr %s2302, 8
      %s2304 = scalar_lea.vmem %s3, %s2303
      // Predicated region
      $region33: #{conv3d_pallas.1} parent=31 // pred_check
        %p2305 = pneg %p95
      $region34: #{conv3d_pallas.1} parent=31 // pred_check_branch
        %2307 = sbr.rel (%p2305) target = $region36
      $region35: #{conv3d_pallas.1} parent=31 // pred_region
        _
      $region36: #{conv3d_pallas.1} parent=31 // pred_fallthru
        _
    $region32: #{conv3d_pallas.1} parent=5 // pred_fallthru
      _
    %p2308 = scmp.le.s32.totalorder 2, %s9
    // Predicated region
    $region37: #{conv3d_pallas.1} parent=5 // pred_check
      %p2309 = pneg %p2308
    $region38: #{conv3d_pallas.1} parent=5 // pred_check_branch
      %2311 = sbr.rel (%p2309) target = $region40
    $region39: #{conv3d_pallas.1} parent=5 // pred_region
      %s2312 = ssub.s32 %s9, 2
      // Predicated region
      $region41: #{conv3d_pallas.1} parent=39 // pred_check
        %p2313 = pneg %p101
      $region42: #{conv3d_pallas.1} parent=39 // pred_check_branch
        %2315 = sbr.rel (%p2313) target = $region44
      $region43: #{conv3d_pallas.1} parent=39 // pred_region
        %p2316 = scmp.lt.s32.totalorder %s15, 5
        %s2317 = scalar_select %p2316, %s15, 5
        %s2318 = smul.addr %s2317, 4
        %s2319 = smul.addr %s2318, 8
        %s2320 = scalar_lea.vmem %s3, %s2319
      $region44: #{conv3d_pallas.1} parent=39 // pred_fallthru
        _
    $region40: #{conv3d_pallas.1} parent=5 // pred_fallthru
      _
  $region6: #{conv3d_pallas.1} parent=0 // loop_footer
    %s13 = sadd.s32 1, %s9
  $region7: #{conv3d_pallas.1} parent=0 // loop_footer_branch
    %8 = sbr.rel target = $region3
  $region8: #{conv3d_pallas.1} parent=0 // loop_exit
    _

</llo_original>
